<compile_context>
chip_gen: v5e
topology: v5e:2x2
jax: 0.10.0
libtpu: 0.0.40
codegen_flags: <defaults>
</compile_context>

<pallas_src>
import math
import jax
import jax.numpy as jnp
from jax.experimental import pallas as pl
from jax.experimental.pallas import tpu as pltpu

# ---------------- config (small, consistent with T5Config) ----------------
B, S, D_MODEL = 2, 8, 32
N_HEADS, D_KV = 4, 8
INNER = N_HEADS * D_KV            # 32
D_FF = 64
NUM_BUCKETS = 32
MAX_DISTANCE = 128
LN_EPS = 1e-6


# ---------------- in-kernel helpers ----------------
def _rms_norm(x, w, eps):
    # T5LayerNorm: no mean subtraction, RMS scaling, learned weight.
    var = jnp.mean(x * x, axis=-1, keepdims=True)
    return x * jax.lax.rsqrt(var + eps) * w


def _gelu_new(x):
    return 0.5 * x * (1.0 + jnp.tanh(math.sqrt(2.0 / math.pi) * (x + 0.044715 * x ** 3)))


# ---------------- fused T5Block kernel (one batch element per grid step) ----------------
def t5_block_kernel(x_ref, bias_ref, ln1_ref, wq_ref, wk_ref, wv_ref, wo_ref,
                    ln2_ref, wi0_ref, wi1_ref, woff_ref, out_ref):
    x = x_ref[0]                     # (S, D_MODEL) f32
    bias = bias_ref[...]             # (H, S, S)    f32 (shared across batch)

    # --- T5LayerSelfAttention ---
    normed = _rms_norm(x, ln1_ref[...], LN_EPS)                      # (S, D)

    # Head-batched projections: one broadcast + 3 batched matmuls, no slicing.
    normed_h = jnp.broadcast_to(normed, (N_HEADS, S, D_MODEL))       # (H, S, D)
    qh = jnp.einsum('hsd,hdk->hsk', normed_h, wq_ref[...],
                    preferred_element_type=jnp.float32)              # (H, S, D_KV)
    kh = jnp.einsum('hsd,hdk->hsk', normed_h, wk_ref[...],
                    preferred_element_type=jnp.float32)
    vh = jnp.einsum('hsd,hdk->hsk', normed_h, wv_ref[...],
                    preferred_element_type=jnp.float32)

    # T5 does NOT scale scores by 1/sqrt(d_kv).
    scores = jnp.einsum('hqd,hkd->hqk', qh, kh,
                        preferred_element_type=jnp.float32) + bias   # (H, S, S)
    scores = scores - jnp.max(scores, axis=-1, keepdims=True)
    p = jnp.exp(scores)
    denom = jnp.sum(p, axis=-1, keepdims=True)
    p = p * pl.reciprocal(denom, approx=False)
    ctx = jnp.einsum('hqk,hkd->hqd', p, vh,
                     preferred_element_type=jnp.float32)             # (H, S, D_KV)

    # Head merge folded into the output projection: batched matmul + sum over heads.
    attn_h = jnp.einsum('hqd,hdm->hqm', ctx, wo_ref[...],
                        preferred_element_type=jnp.float32)          # (H, S, D)
    attn_out = jnp.sum(attn_h, axis=0)                               # (S, D)

    h1 = x + attn_out                                                # residual

    # --- T5LayerFF (gated act dense) ---
    n2 = _rms_norm(h1, ln2_ref[...], LN_EPS)
    g = _gelu_new(jnp.dot(n2, wi0_ref[...], preferred_element_type=jnp.float32))
    lin = jnp.dot(n2, wi1_ref[...], preferred_element_type=jnp.float32)
    ff = jnp.dot(g * lin, woff_ref[...], preferred_element_type=jnp.float32)

    out_ref[0] = h1 + ff


# ---------------- glue: relative position bias (plain JAX) ----------------
def _relative_position_bucket(relative_position, bidirectional=True,
                              num_buckets=32, max_distance=128):
    relative_buckets = jnp.zeros_like(relative_position)
    if bidirectional:
        num_buckets //= 2
        relative_buckets = relative_buckets + (relative_position > 0).astype(jnp.int32) * num_buckets
        relative_position = jnp.abs(relative_position)
    else:
        relative_position = -jnp.minimum(relative_position, jnp.zeros_like(relative_position))
    max_exact = num_buckets // 2
    is_small = relative_position < max_exact
    safe_rel = jnp.where(relative_position > 0, relative_position, 1)
    rel_if_large = max_exact + (
        jnp.log(safe_rel.astype(jnp.float32) / max_exact)
        / math.log(max_distance / max_exact) * (num_buckets - max_exact)
    ).astype(jnp.int32)
    rel_if_large = jnp.minimum(rel_if_large, num_buckets - 1)
    relative_buckets = relative_buckets + jnp.where(is_small, relative_position, rel_if_large)
    return relative_buckets


def compute_bias(rel_bias_table, q_len, k_len, is_decoder=False):
    ctx = jnp.arange(q_len, dtype=jnp.int32)[:, None]
    mem = jnp.arange(k_len, dtype=jnp.int32)[None, :]
    rel = mem - ctx
    buckets = _relative_position_bucket(rel, bidirectional=not is_decoder,
                                        num_buckets=NUM_BUCKETS,
                                        max_distance=MAX_DISTANCE)
    values = rel_bias_table[buckets]                          # (q, k, H)
    return jnp.transpose(values, (2, 0, 1))[None]             # (1, H, q, k)


# ---------------- one-time parameter preparation (outside the per-call path) ----------------
def prepare_params(params):
    ln1_w, wq, wk, wv, wo, ln2_w, wi0, wi1, wo_ff = params

    def to_heads_in(w):  # (D_MODEL, H*D_KV) -> (H, D_MODEL, D_KV)
        return jnp.transpose(w.reshape(D_MODEL, N_HEADS, D_KV), (1, 0, 2))

    wq3, wk3, wv3 = to_heads_in(wq), to_heads_in(wk), to_heads_in(wv)
    wo3 = wo.reshape(N_HEADS, D_KV, D_MODEL)                  # (H, D_KV, D_MODEL)
    return (ln1_w.reshape(1, D_MODEL), wq3, wk3, wv3, wo3,
            ln2_w.reshape(1, D_MODEL), wi0, wi1, wo_ff)


# ---------------- wrapper: pallas_call ----------------
def t5_block_forward(hidden_states, position_bias, prepared):
    ln1_w2, wq3, wk3, wv3, wo3, ln2_w2, wi0, wi1, wo_ff = prepared

    # Pass the bias UN-broadcast: (H, S, S) shared by every batch element.
    bias_hss = position_bias.reshape(N_HEADS, S, S)

    const3 = lambda b: (0, 0, 0)
    const2 = lambda b: (0, 0)

    out = pl.pallas_call(
        t5_block_kernel,
        out_shape=jax.ShapeDtypeStruct((B, S, D_MODEL), jnp.float32),
        grid=(B,),
        in_specs=[
            pl.BlockSpec((1, S, D_MODEL), lambda b: (b, 0, 0)),          # x
            pl.BlockSpec((N_HEADS, S, S), const3),                       # bias (shared)
            pl.BlockSpec((1, D_MODEL), const2),                          # ln1
            pl.BlockSpec((N_HEADS, D_MODEL, D_KV), const3),              # wq
            pl.BlockSpec((N_HEADS, D_MODEL, D_KV), const3),              # wk
            pl.BlockSpec((N_HEADS, D_MODEL, D_KV), const3),              # wv
            pl.BlockSpec((N_HEADS, D_KV, D_MODEL), const3),              # wo
            pl.BlockSpec((1, D_MODEL), const2),                          # ln2
            pl.BlockSpec((D_MODEL, D_FF), const2),                       # wi0
            pl.BlockSpec((D_MODEL, D_FF), const2),                       # wi1
            pl.BlockSpec((D_FF, D_MODEL), const2),                       # wo_ff
        ],
        out_specs=pl.BlockSpec((1, S, D_MODEL), lambda b: (b, 0, 0)),
        compiler_params=pltpu.CompilerParams(
            dimension_semantics=("parallel",)),                          # v7x: 2 TCs
    )(hidden_states, bias_hss, ln1_w2, wq3, wk3, wv3, wo3,
      ln2_w2, wi0, wi1, wo_ff)

    # T5Block (encoder) returns (hidden_states, position_bias)
    return out, position_bias


# ---------------- pure-JAX reference (for correctness check) ----------------
def ref_forward(x, position_bias, params):
    ln1_w, wq, wk, wv, wo, ln2_w, wi0, wi1, wo_ff = params

    def rms(t, w):
        var = jnp.mean(t * t, axis=-1, keepdims=True)
        return t * jax.lax.rsqrt(var + LN_EPS) * w

    n = rms(x, ln1_w)
    q, k, v = n @ wq, n @ wk, n @ wv

    def shape(t):
        return t.reshape(B, S, N_HEADS, D_KV).transpose(0, 2, 1, 3)

    qh, kh, vh = shape(q), shape(k), shape(v)
    scores = jnp.einsum('bhqd,bhkd->bhqk', qh, kh) + position_bias
    w_ = jax.nn.softmax(scores, axis=-1)
    attn = jnp.einsum('bhqk,bhkd->bhqd', w_, vh).transpose(0, 2, 1, 3).reshape(B, S, INNER)
    h1 = x + attn @ wo
    n2 = rms(h1, ln2_w)
    g = _gelu_new(n2 @ wi0)
    lin = n2 @ wi1
    return h1 + (g * lin) @ wo_ff


# ---------------- main ----------------
if __name__ == "__main__":
    key = jax.random.PRNGKey(0)
    ks = jax.random.split(key, 11)
    scale = 0.05

    hidden_states = jax.random.normal(ks[0], (B, S, D_MODEL), jnp.float32)
    ln1_w = jnp.ones((D_MODEL,), jnp.float32)
    wq = scale * jax.random.normal(ks[1], (D_MODEL, INNER), jnp.float32)
    wk = scale * jax.random.normal(ks[2], (D_MODEL, INNER), jnp.float32)
    wv = scale * jax.random.normal(ks[3], (D_MODEL, INNER), jnp.float32)
    wo = scale * jax.random.normal(ks[4], (INNER, D_MODEL), jnp.float32)
    ln2_w = jnp.ones((D_MODEL,), jnp.float32)
    wi0 = scale * jax.random.normal(ks[5], (D_MODEL, D_FF), jnp.float32)
    wi1 = scale * jax.random.normal(ks[6], (D_MODEL, D_FF), jnp.float32)
    wo_ff = scale * jax.random.normal(ks[7], (D_FF, D_MODEL), jnp.float32)
    rel_bias_table = scale * jax.random.normal(ks[8], (NUM_BUCKETS, N_HEADS), jnp.float32)

    params = (ln1_w, wq, wk, wv, wo, ln2_w, wi0, wi1, wo_ff)
    prepared = prepare_params(params)   # one-time weight re-layout (not per call)

    # attention_mask=None -> position_bias is the pure relative-attention bias
    position_bias = compute_bias(rel_bias_table, S, S, is_decoder=False)

    out, pb = t5_block_forward(hidden_states, position_bias, prepared)
    out = jax.block_until_ready(out)

    ref = ref_forward(hidden_states, position_bias, params)
    # 2e-3 margin: reference matmuls run at default TPU precision (bf16 MXU
    # inputs) while the kernel accumulates in f32; softmax reciprocal is exact.
    assert jnp.allclose(out, ref, rtol=2e-3, atol=2e-3), \
        f"max err {jnp.max(jnp.abs(out - ref))}"

    print("KERNEL_OK")
</pallas_src>

<mosaic_0001>
module attributes {stable_mosaic.version = 11 : i64} {
  func.func @t5_block_kernel(%arg0: i32, %arg1: memref<1x8x32xf32, #tpu.memory_space<vmem>>, %arg2: memref<4x8x8xf32, #tpu.memory_space<vmem>>, %arg3: memref<1x32xf32, #tpu.memory_space<vmem>>, %arg4: memref<4x32x8xf32, #tpu.memory_space<vmem>>, %arg5: memref<4x32x8xf32, #tpu.memory_space<vmem>>, %arg6: memref<4x32x8xf32, #tpu.memory_space<vmem>>, %arg7: memref<4x8x32xf32, #tpu.memory_space<vmem>>, %arg8: memref<1x32xf32, #tpu.memory_space<vmem>>, %arg9: memref<32x64xf32, #tpu.memory_space<vmem>>, %arg10: memref<32x64xf32, #tpu.memory_space<vmem>>, %arg11: memref<64x32xf32, #tpu.memory_space<vmem>>, %arg12: memref<1x8x32xf32, #tpu.memory_space<vmem>>) attributes {dimension_semantics = [#tpu.dimension_semantics<parallel>], iteration_bounds = array<i64: 2>, scalar_prefetch = 0 : i64, scratch_operands = 0 : i64, tpu.core_type = #tpu.core_type<tc>, window_params = [{transform_indices = @transform_0, window_bounds = array<i64: 1, 8, 32>}, {pipeline_mode = #tpu.pipeline_mode<synchronous>, transform_indices = @transform_1, window_bounds = array<i64: 4, 8, 8>}, {pipeline_mode = #tpu.pipeline_mode<synchronous>, transform_indices = @transform_2, window_bounds = array<i64: 1, 32>}, {pipeline_mode = #tpu.pipeline_mode<synchronous>, transform_indices = @transform_3, window_bounds = array<i64: 4, 32, 8>}, {pipeline_mode = #tpu.pipeline_mode<synchronous>, transform_indices = @transform_4, window_bounds = array<i64: 4, 32, 8>}, {pipeline_mode = #tpu.pipeline_mode<synchronous>, transform_indices = @transform_5, window_bounds = array<i64: 4, 32, 8>}, {pipeline_mode = #tpu.pipeline_mode<synchronous>, transform_indices = @transform_6, window_bounds = array<i64: 4, 8, 32>}, {pipeline_mode = #tpu.pipeline_mode<synchronous>, transform_indices = @transform_7, window_bounds = array<i64: 1, 32>}, {pipeline_mode = #tpu.pipeline_mode<synchronous>, transform_indices = @transform_8, window_bounds = array<i64: 32, 64>}, {pipeline_mode = #tpu.pipeline_mode<synchronous>, transform_indices = @transform_9, window_bounds = array<i64: 32, 64>}, {pipeline_mode = #tpu.pipeline_mode<synchronous>, transform_indices = @transform_10, window_bounds = array<i64: 64, 32>}, {transform_indices = @transform_11, window_bounds = array<i64: 1, 8, 32>}]} {
    %c0 = arith.constant 0 : index
    %c0_0 = arith.constant 0 : index
    %c0_1 = arith.constant 0 : index
    %0 = vector.load %arg1[%c0, %c0_0, %c0_1] : memref<1x8x32xf32, #tpu.memory_space<vmem>>, vector<1x8x32xf32>
    %1 = vector.shape_cast %0 : vector<1x8x32xf32> to vector<8x32xf32>
    %c0_2 = arith.constant 0 : index
    %c0_3 = arith.constant 0 : index
    %c0_4 = arith.constant 0 : index
    %2 = vector.load %arg2[%c0_2, %c0_3, %c0_4] : memref<4x8x8xf32, #tpu.memory_space<vmem>>, vector<4x8x8xf32>
    %c0_5 = arith.constant 0 : index
    %c0_6 = arith.constant 0 : index
    %3 = vector.load %arg3[%c0_5, %c0_6] : memref<1x32xf32, #tpu.memory_space<vmem>>, vector<1x32xf32>
    %4 = arith.mulf %1, %1 : vector<8x32xf32>
    %cst = arith.constant dense<0.000000e+00> : vector<8xf32>
    %5 = vector.multi_reduction <add>, %4, %cst [1] : vector<8x32xf32> to vector<8xf32>
    %6 = vector.shape_cast %5 : vector<8xf32> to vector<8x1xf32>
    %cst_7 = arith.constant 3.200000e+01 : f32
    %7 = vector.broadcast %cst_7 : f32 to vector<8x1xf32>
    %8 = arith.divf %6, %7 : vector<8x1xf32>
    %cst_8 = arith.constant 9.99999997E-7 : f32
    %9 = vector.broadcast %cst_8 : f32 to vector<8x1xf32>
    %10 = arith.addf %8, %9 : vector<8x1xf32>
    %11 = math.rsqrt %10 : vector<8x1xf32>
    %12 = vector.broadcast %11 : vector<8x1xf32> to vector<8x32xf32>
    %13 = arith.mulf %1, %12 : vector<8x32xf32>
    %14 = vector.broadcast %3 : vector<1x32xf32> to vector<8x32xf32>
    %15 = arith.mulf %13, %14 : vector<8x32xf32>
    %16 = vector.shape_cast %15 : vector<8x32xf32> to vector<1x8x32xf32>
    %17 = vector.broadcast %16 : vector<1x8x32xf32> to vector<4x8x32xf32>
    %c0_9 = arith.constant 0 : index
    %c0_10 = arith.constant 0 : index
    %c0_11 = arith.constant 0 : index
    %18 = vector.load %arg4[%c0_9, %c0_10, %c0_11] : memref<4x32x8xf32, #tpu.memory_space<vmem>>, vector<4x32x8xf32>
    "tpu.trace_start"() <{level = 10 : i32, message = "hsd,hdk->hsk"}> : () -> ()
    %cst_12 = arith.constant dense<0.000000e+00> : vector<4x8x8xf32>
    %19 = tpu.matmul %17, %18, %cst_12 {dimension_numbers = #tpu.dot_dimension_numbers<[2], [1], [1], [2], [0, 0, 0, 1, 1, 2], [0], [0]>} : vector<4x8x32xf32>, vector<4x32x8xf32>, vector<4x8x8xf32> -> vector<4x8x8xf32>
    "tpu.trace_stop"() : () -> ()
    %c0_13 = arith.constant 0 : index
    %c0_14 = arith.constant 0 : index
    %c0_15 = arith.constant 0 : index
    %20 = vector.load %arg5[%c0_13, %c0_14, %c0_15] : memref<4x32x8xf32, #tpu.memory_space<vmem>>, vector<4x32x8xf32>
    "tpu.trace_start"() <{level = 10 : i32, message = "hsd,hdk->hsk"}> : () -> ()
    %cst_16 = arith.constant dense<0.000000e+00> : vector<4x8x8xf32>
    %21 = tpu.matmul %17, %20, %cst_16 {dimension_numbers = #tpu.dot_dimension_numbers<[2], [1], [1], [2], [0, 0, 0, 1, 1, 2], [0], [0]>} : vector<4x8x32xf32>, vector<4x32x8xf32>, vector<4x8x8xf32> -> vector<4x8x8xf32>
    "tpu.trace_stop"() : () -> ()
    %c0_17 = arith.constant 0 : index
    %c0_18 = arith.constant 0 : index
    %c0_19 = arith.constant 0 : index
    %22 = vector.load %arg6[%c0_17, %c0_18, %c0_19] : memref<4x32x8xf32, #tpu.memory_space<vmem>>, vector<4x32x8xf32>
    "tpu.trace_start"() <{level = 10 : i32, message = "hsd,hdk->hsk"}> : () -> ()
    %cst_20 = arith.constant dense<0.000000e+00> : vector<4x8x8xf32>
    %23 = tpu.matmul %17, %22, %cst_20 {dimension_numbers = #tpu.dot_dimension_numbers<[2], [1], [1], [2], [0, 0, 0, 1, 1, 2], [0], [0]>} : vector<4x8x32xf32>, vector<4x32x8xf32>, vector<4x8x8xf32> -> vector<4x8x8xf32>
    "tpu.trace_stop"() : () -> ()
    "tpu.trace_start"() <{level = 10 : i32, message = "hqd,hkd->hqk"}> : () -> ()
    %cst_21 = arith.constant dense<0.000000e+00> : vector<4x8x8xf32>
    %24 = tpu.matmul %19, %21, %cst_21 {dimension_numbers = #tpu.dot_dimension_numbers<[2], [2], [1], [1], [0, 0, 0, 1, 1, 1], [0], [0]>} : vector<4x8x8xf32>, vector<4x8x8xf32>, vector<4x8x8xf32> -> vector<4x8x8xf32>
    "tpu.trace_stop"() : () -> ()
    %25 = arith.addf %24, %2 : vector<4x8x8xf32>
    %cst_22 = arith.constant dense<0xFF800000> : vector<4x8xf32>
    %26 = vector.multi_reduction <maximumf>, %25, %cst_22 [2] : vector<4x8x8xf32> to vector<4x8xf32>
    %27 = vector.shape_cast %26 : vector<4x8xf32> to vector<4x8x1xf32>
    %28 = vector.broadcast %27 : vector<4x8x1xf32> to vector<4x8x8xf32>
    %29 = arith.subf %25, %28 : vector<4x8x8xf32>
    %30 = math.exp %29 : vector<4x8x8xf32>
    %cst_23 = arith.constant dense<0.000000e+00> : vector<4x8xf32>
    %31 = vector.multi_reduction <add>, %30, %cst_23 [2] : vector<4x8x8xf32> to vector<4x8xf32>
    %32 = vector.shape_cast %31 : vector<4x8xf32> to vector<4x8x1xf32>
    %33 = tpu.reciprocal %32 : vector<4x8x1xf32> -> vector<4x8x1xf32>
    %34 = vector.broadcast %33 : vector<4x8x1xf32> to vector<4x8x8xf32>
    %35 = arith.mulf %30, %34 : vector<4x8x8xf32>
    "tpu.trace_start"() <{level = 10 : i32, message = "hqk,hkd->hqd"}> : () -> ()
    %cst_24 = arith.constant dense<0.000000e+00> : vector<4x8x8xf32>
    %36 = tpu.matmul %35, %23, %cst_24 {dimension_numbers = #tpu.dot_dimension_numbers<[2], [1], [1], [2], [0, 0, 0, 1, 1, 2], [0], [0]>} : vector<4x8x8xf32>, vector<4x8x8xf32>, vector<4x8x8xf32> -> vector<4x8x8xf32>
    "tpu.trace_stop"() : () -> ()
    %c0_25 = arith.constant 0 : index
    %c0_26 = arith.constant 0 : index
    %c0_27 = arith.constant 0 : index
    %37 = vector.load %arg7[%c0_25, %c0_26, %c0_27] : memref<4x8x32xf32, #tpu.memory_space<vmem>>, vector<4x8x32xf32>
    "tpu.trace_start"() <{level = 10 : i32, message = "hqd,hdm->hqm"}> : () -> ()
    %cst_28 = arith.constant dense<0.000000e+00> : vector<4x8x32xf32>
    %38 = tpu.matmul %36, %37, %cst_28 {dimension_numbers = #tpu.dot_dimension_numbers<[2], [1], [1], [2], [0, 0, 0, 1, 1, 2], [0], [0]>} : vector<4x8x8xf32>, vector<4x8x32xf32>, vector<4x8x32xf32> -> vector<4x8x32xf32>
    "tpu.trace_stop"() : () -> ()
    %cst_29 = arith.constant dense<0.000000e+00> : vector<8x32xf32>
    %39 = vector.multi_reduction <add>, %38, %cst_29 [0] : vector<4x8x32xf32> to vector<8x32xf32>
    %40 = arith.addf %1, %39 : vector<8x32xf32>
    %c0_30 = arith.constant 0 : index
    %c0_31 = arith.constant 0 : index
    %41 = vector.load %arg8[%c0_30, %c0_31] : memref<1x32xf32, #tpu.memory_space<vmem>>, vector<1x32xf32>
    %42 = arith.mulf %40, %40 : vector<8x32xf32>
    %cst_32 = arith.constant dense<0.000000e+00> : vector<8xf32>
    %43 = vector.multi_reduction <add>, %42, %cst_32 [1] : vector<8x32xf32> to vector<8xf32>
    %44 = vector.shape_cast %43 : vector<8xf32> to vector<8x1xf32>
    %cst_33 = arith.constant 3.200000e+01 : f32
    %45 = vector.broadcast %cst_33 : f32 to vector<8x1xf32>
    %46 = arith.divf %44, %45 : vector<8x1xf32>
    %cst_34 = arith.constant 9.99999997E-7 : f32
    %47 = vector.broadcast %cst_34 : f32 to vector<8x1xf32>
    %48 = arith.addf %46, %47 : vector<8x1xf32>
    %49 = math.rsqrt %48 : vector<8x1xf32>
    %50 = vector.broadcast %49 : vector<8x1xf32> to vector<8x32xf32>
    %51 = arith.mulf %40, %50 : vector<8x32xf32>
    %52 = vector.broadcast %41 : vector<1x32xf32> to vector<8x32xf32>
    %53 = arith.mulf %51, %52 : vector<8x32xf32>
    %c0_35 = arith.constant 0 : index
    %c0_36 = arith.constant 0 : index
    %54 = vector.load %arg9[%c0_35, %c0_36] : memref<32x64xf32, #tpu.memory_space<vmem>>, vector<32x64xf32>
    %cst_37 = arith.constant dense<0.000000e+00> : vector<8x64xf32>
    %55 = tpu.matmul %53, %54, %cst_37 {dimension_numbers = #tpu.dot_dimension_numbers<[1], [0], [0], [1], [0, 0, 1, 1], [], []>} : vector<8x32xf32>, vector<32x64xf32>, vector<8x64xf32> -> vector<8x64xf32>
    %cst_38 = arith.constant 5.000000e-01 : f32
    %56 = vector.broadcast %cst_38 : f32 to vector<8x64xf32>
    %57 = arith.mulf %56, %55 : vector<8x64xf32>
    %58 = arith.mulf %55, %55 : vector<8x64xf32>
    %59 = arith.mulf %55, %58 : vector<8x64xf32>
    %cst_39 = arith.constant 4.471500e-02 : f32
    %60 = vector.broadcast %cst_39 : f32 to vector<8x64xf32>
    %61 = arith.mulf %60, %59 : vector<8x64xf32>
    %62 = arith.addf %55, %61 : vector<8x64xf32>
    %cst_40 = arith.constant 0.797884583 : f32
    %63 = vector.broadcast %cst_40 : f32 to vector<8x64xf32>
    %64 = arith.mulf %63, %62 : vector<8x64xf32>
    %65 = math.tanh %64 : vector<8x64xf32>
    %cst_41 = arith.constant 1.000000e+00 : f32
    %66 = vector.broadcast %cst_41 : f32 to vector<8x64xf32>
    %67 = arith.addf %66, %65 : vector<8x64xf32>
    %68 = arith.mulf %57, %67 : vector<8x64xf32>
    %c0_42 = arith.constant 0 : index
    %c0_43 = arith.constant 0 : index
    %69 = vector.load %arg10[%c0_42, %c0_43] : memref<32x64xf32, #tpu.memory_space<vmem>>, vector<32x64xf32>
    %cst_44 = arith.constant dense<0.000000e+00> : vector<8x64xf32>
    %70 = tpu.matmul %53, %69, %cst_44 {dimension_numbers = #tpu.dot_dimension_numbers<[1], [0], [0], [1], [0, 0, 1, 1], [], []>} : vector<8x32xf32>, vector<32x64xf32>, vector<8x64xf32> -> vector<8x64xf32>
    %71 = arith.mulf %68, %70 : vector<8x64xf32>
    %c0_45 = arith.constant 0 : index
    %c0_46 = arith.constant 0 : index
    %72 = vector.load %arg11[%c0_45, %c0_46] : memref<64x32xf32, #tpu.memory_space<vmem>>, vector<64x32xf32>
    %cst_47 = arith.constant dense<0.000000e+00> : vector<8x32xf32>
    %73 = tpu.matmul %71, %72, %cst_47 {dimension_numbers = #tpu.dot_dimension_numbers<[1], [0], [0], [1], [0, 0, 1, 1], [], []>} : vector<8x64xf32>, vector<64x32xf32>, vector<8x32xf32> -> vector<8x32xf32>
    %74 = arith.addf %40, %73 : vector<8x32xf32>
    %c0_48 = arith.constant 0 : index
    %c0_49 = arith.constant 0 : index
    %c0_50 = arith.constant 0 : index
    %75 = vector.load %arg12[%c0_48, %c0_49, %c0_50] : memref<1x8x32xf32, #tpu.memory_space<vmem>>, vector<1x8x32xf32>
    %76 = vector.shape_cast %75 : vector<1x8x32xf32> to vector<8x32xf32>
    %77 = vector.shape_cast %74 : vector<8x32xf32> to vector<1x8x32xf32>
    tpu.vector_store %arg12[%c0_48, %c0_49, %c0_50], %77 {strides = array<i32>} : memref<1x8x32xf32, #tpu.memory_space<vmem>>, vector<1x8x32xf32>,
    return
  }
  func.func @transform_0(%arg0: i32) -> (i32, i32, i32) {
    %c0_i32 = arith.constant 0 : i32
    %c0_i32_0 = arith.constant 0 : i32
    %c0_i32_1 = arith.constant 0 : i32
    return %arg0, %c0_i32, %c0_i32_0 : i32, i32, i32
  }
  func.func @transform_1(%arg0: i32) -> (i32, i32, i32) {
    %c0_i32 = arith.constant 0 : i32
    %c0_i32_0 = arith.constant 0 : i32
    %c0_i32_1 = arith.constant 0 : i32
    %c0_i32_2 = arith.constant 0 : i32
    return %c0_i32, %c0_i32_0, %c0_i32_1 : i32, i32, i32
  }
  func.func @transform_2(%arg0: i32) -> (i32, i32) {
    %c0_i32 = arith.constant 0 : i32
    %c0_i32_0 = arith.constant 0 : i32
    %c0_i32_1 = arith.constant 0 : i32
    return %c0_i32, %c0_i32_0 : i32, i32
  }
  func.func @transform_3(%arg0: i32) -> (i32, i32, i32) {
    %c0_i32 = arith.constant 0 : i32
    %c0_i32_0 = arith.constant 0 : i32
    %c0_i32_1 = arith.constant 0 : i32
    %c0_i32_2 = arith.constant 0 : i32
    return %c0_i32, %c0_i32_0, %c0_i32_1 : i32, i32, i32
  }
  func.func @transform_4(%arg0: i32) -> (i32, i32, i32) {
    %c0_i32 = arith.constant 0 : i32
    %c0_i32_0 = arith.constant 0 : i32
    %c0_i32_1 = arith.constant 0 : i32
    %c0_i32_2 = arith.constant 0 : i32
    return %c0_i32, %c0_i32_0, %c0_i32_1 : i32, i32, i32
  }
  func.func @transform_5(%arg0: i32) -> (i32, i32, i32) {
    %c0_i32 = arith.constant 0 : i32
    %c0_i32_0 = arith.constant 0 : i32
    %c0_i32_1 = arith.constant 0 : i32
    %c0_i32_2 = arith.constant 0 : i32
    return %c0_i32, %c0_i32_0, %c0_i32_1 : i32, i32, i32
  }
  func.func @transform_6(%arg0: i32) -> (i32, i32, i32) {
    %c0_i32 = arith.constant 0 : i32
    %c0_i32_0 = arith.constant 0 : i32
    %c0_i32_1 = arith.constant 0 : i32
    %c0_i32_2 = arith.constant 0 : i32
    return %c0_i32, %c0_i32_0, %c0_i32_1 : i32, i32, i32
  }
  func.func @transform_7(%arg0: i32) -> (i32, i32) {
    %c0_i32 = arith.constant 0 : i32
    %c0_i32_0 = arith.constant 0 : i32
    %c0_i32_1 = arith.constant 0 : i32
    return %c0_i32, %c0_i32_0 : i32, i32
  }
  func.func @transform_8(%arg0: i32) -> (i32, i32) {
    %c0_i32 = arith.constant 0 : i32
    %c0_i32_0 = arith.constant 0 : i32
    %c0_i32_1 = arith.constant 0 : i32
    return %c0_i32, %c0_i32_0 : i32, i32
  }
  func.func @transform_9(%arg0: i32) -> (i32, i32) {
    %c0_i32 = arith.constant 0 : i32
    %c0_i32_0 = arith.constant 0 : i32
    %c0_i32_1 = arith.constant 0 : i32
    return %c0_i32, %c0_i32_0 : i32, i32
  }
  func.func @transform_10(%arg0: i32) -> (i32, i32) {
    %c0_i32 = arith.constant 0 : i32
    %c0_i32_0 = arith.constant 0 : i32
    %c0_i32_1 = arith.constant 0 : i32
    return %c0_i32, %c0_i32_0 : i32, i32
  }
  func.func @transform_11(%arg0: i32) -> (i32, i32, i32) {
    %c0_i32 = arith.constant 0 : i32
    %c0_i32_0 = arith.constant 0 : i32
    %c0_i32_1 = arith.constant 0 : i32
    return %arg0, %c0_i32, %c0_i32_0 : i32, i32, i32
  }
}

</mosaic_0001>

<llo_original>
// kernel: tpu_custom_call.1
$region0: #{tpu_custom_call.1}
  #allocation0 [shape = 'u32[]', space=smem, size = 0x4, offset = 0x4, fixed_abs, tag = 'smem constant byte address 0x4 - core index']
  #allocation1 [shape = 'u32[72,128]{1,0:T(1,128)}', space=vmem, size = 0x9000, scoped, tag = 'internal scratch']
  %s0 = inlined_call_operand.vmem [shape: f32[2,8,32], index: 0, kind: input, shape index: {}]
  %s1 = inlined_call_operand.vmem [shape: f32[4,8,8], index: 1, kind: input, shape index: {}]
  %s2 = inlined_call_operand.vmem [shape: f32[1,32], index: 2, kind: input, shape index: {}]
  %s3 = inlined_call_operand.vmem [shape: f32[4,32,8], index: 3, kind: input, shape index: {}]
  %s4 = inlined_call_operand.vmem [shape: f32[4,32,8], index: 4, kind: input, shape index: {}]
  %s5 = inlined_call_operand.vmem [shape: f32[4,32,8], index: 5, kind: input, shape index: {}]
  %s6 = inlined_call_operand.vmem [shape: f32[4,8,32], index: 6, kind: input, shape index: {}]
  %s7 = inlined_call_operand.vmem [shape: f32[1,32], index: 7, kind: input, shape index: {}]
  %s8 = inlined_call_operand.vmem [shape: f32[32,64], index: 8, kind: input, shape index: {}]
  %s9 = inlined_call_operand.vmem [shape: f32[32,64], index: 9, kind: input, shape index: {}]
  %s10 = inlined_call_operand.vmem [shape: f32[64,32], index: 10, kind: input, shape index: {}]
  %s11 = inlined_call_operand.hbm [shape: f32[2,8,32], index: 11, kind: output, shape index: {}]
  %s12 = sld [smem:[#allocation0]]
  $region77: #{tpu_custom_call.1} parent=0
    _
  %s14 = ssub.s32 1, %s12
  %s15 = scalar_select 0, %s14, %s12
  $region1: #{tpu_custom_call.1} parent=0
    #allocation2 [shape = 'u8[8192]{0}', space=vmem, size = 0x2000, scoped, tag = 'output window, operand 0']
    #allocation3 [shape = 's32[2]{0}', space=sflag, size = 0x8, scoped, tag = 'scoped memory for tpu_custom_call.1']
    %16 = vsyncpa [#allocation3], 0
    %s17 = scalar_lea.sflag [#allocation3], 1
    %18 = vsyncpa %s17, 0
    loop: start=0, step=1, limit=4
    $region2: #{tpu_custom_call.1} parent=1 // loop_pre_header
      _
    $region3: #{tpu_custom_call.1} parent=1 // loop_header
      %s20 = sphi 0, %s24
      %p21 = scmp.ge.s32.totalorder %s20, 4
      %s30 = sphi 0, %s32
      %s33 = sphi 0, %s30
      %s34 = sphi 0, %s33
      %s50 = sphi 0, %s34
      %s54 = sphi 0, %s54
      %s56 = sphi 0, %s54
      %s57 = sphi 0, %s56
      %s71 = sphi 0, %s57
      %s75 = sphi 0, %s75
      %s77 = sphi 0, %s75
      %s78 = sphi 0, %s77
      %s92 = sphi 0, %s78
      %s96 = sphi 0, %s96
      %s98 = sphi 0, %s96
      %s99 = sphi 0, %s98
      %s113 = sphi 0, %s99
      %s117 = sphi 0, %s117
      %s119 = sphi 0, %s117
      %s120 = sphi 0, %s119
      %s134 = sphi 0, %s120
      %s138 = sphi 0, %s138
      %s140 = sphi 0, %s138
      %s141 = sphi 0, %s140
      %s155 = sphi 0, %s141
      %s159 = sphi 0, %s159
      %s161 = sphi 0, %s159
      %s162 = sphi 0, %s161
      %s176 = sphi 0, %s162
      %s180 = sphi 0, %s180
      %s182 = sphi 0, %s180
      %s183 = sphi 0, %s182
      %s197 = sphi 0, %s183
      %s201 = sphi 0, %s201
      %s203 = sphi 0, %s201
      %s204 = sphi 0, %s203
      %s218 = sphi 0, %s204
      %s222 = sphi 0, %s222
      %s224 = sphi 0, %s222
      %s225 = sphi 0, %s224
      %s239 = sphi 0, %s225
      %s243 = sphi 0, %s243
      %s245 = sphi 0, %s243
      %s246 = sphi 0, %s245
      %s260 = sphi 0, %s246
      %s266 = sphi 0, %s268
      %s269 = sphi 0, %s266
      %s270 = sphi 0, %s269
      %s286 = sphi 0, %s270
    $region4: #{tpu_custom_call.1} parent=1 // loop_header_branch
      %23 = sbr.rel (%p21) target = $region8
    $region5: #{tpu_custom_call.1} parent=1 // loop_body
      %s25 = ssub.s32 %s20, 1
      %s26 = ssub.s32 %s20, 2
      %s27 = sadd.s32 %s20, 1
      %s28 = ssub.s32 %s20, %s27
      %p29 = scmp.eq.s32.totalorder %s28, 0
      %s31 = sadd.s32 %s30, 1
      %s32 = scalar_select %p29, %s30, %s31
      %p35 = pneg %p29
      %p36 = scmp.eq.s32.totalorder %s20, 1
      %p37 = por %p35, %p36
      %p38 = scmp.ne.s32.totalorder %s30, %s33
      %p39 = scmp.eq.s32.totalorder %s20, 0
      %p40 = por %p38, %p39
      %p41 = scmp.ne.s32.totalorder %s30, %s33
      %p42 = scmp.eq.s32.totalorder %s25, 1
      %p43 = por %p41, %p42
      %p44 = scmp.ne.s32.totalorder %s33, %s34
      %p45 = scmp.eq.s32.totalorder %s25, 0
      %p46 = por %p44, %p45
      %p47 = scmp.ne.s32.totalorder %s33, %s34
      %p48 = scmp.eq.s32.totalorder %s26, 1
      %p49 = por %p47, %p48
      %p51 = scmp.ne.s32.totalorder %s34, %s50
      %p52 = scmp.eq.s32.totalorder %s26, 0
      %p53 = por %p51, %p52
      %s55 = sadd.s32 %s54, 1
      %p58 = scmp.eq.s32.totalorder %s20, 1
      %p59 = scmp.ne.s32.totalorder %s54, %s56
      %p60 = scmp.eq.s32.totalorder %s20, 0
      %p61 = por %p59, %p60
      %p62 = scmp.ne.s32.totalorder %s54, %s56
      %p63 = scmp.eq.s32.totalorder %s25, 1
      %p64 = por %p62, %p63
      %p65 = scmp.ne.s32.totalorder %s56, %s57
      %p66 = scmp.eq.s32.totalorder %s25, 0
      %p67 = por %p65, %p66
      %p68 = scmp.ne.s32.totalorder %s56, %s57
      %p69 = scmp.eq.s32.totalorder %s26, 1
      %p70 = por %p68, %p69
      %p72 = scmp.ne.s32.totalorder %s57, %s71
      %p73 = scmp.eq.s32.totalorder %s26, 0
      %p74 = por %p72, %p73
      %s76 = sadd.s32 %s75, 1
      %p79 = scmp.eq.s32.totalorder %s20, 1
      %p80 = scmp.ne.s32.totalorder %s75, %s77
      %p81 = scmp.eq.s32.totalorder %s20, 0
      %p82 = por %p80, %p81
      %p83 = scmp.ne.s32.totalorder %s75, %s77
      %p84 = scmp.eq.s32.totalorder %s25, 1
      %p85 = por %p83, %p84
      %p86 = scmp.ne.s32.totalorder %s77, %s78
      %p87 = scmp.eq.s32.totalorder %s25, 0
      %p88 = por %p86, %p87
      %p89 = scmp.ne.s32.totalorder %s77, %s78
      %p90 = scmp.eq.s32.totalorder %s26, 1
      %p91 = por %p89, %p90
      %p93 = scmp.ne.s32.totalorder %s78, %s92
      %p94 = scmp.eq.s32.totalorder %s26, 0
      %p95 = por %p93, %p94
      %s97 = sadd.s32 %s96, 1
      %p100 = scmp.eq.s32.totalorder %s20, 1
      %p101 = scmp.ne.s32.totalorder %s96, %s98
      %p102 = scmp.eq.s32.totalorder %s20, 0
      %p103 = por %p101, %p102
      %p104 = scmp.ne.s32.totalorder %s96, %s98
      %p105 = scmp.eq.s32.totalorder %s25, 1
      %p106 = por %p104, %p105
      %p107 = scmp.ne.s32.totalorder %s98, %s99
      %p108 = scmp.eq.s32.totalorder %s25, 0
      %p109 = por %p107, %p108
      %p110 = scmp.ne.s32.totalorder %s98, %s99
      %p111 = scmp.eq.s32.totalorder %s26, 1
      %p112 = por %p110, %p111
      %p114 = scmp.ne.s32.totalorder %s99, %s113
      %p115 = scmp.eq.s32.totalorder %s26, 0
      %p116 = por %p114, %p115
      %s118 = sadd.s32 %s117, 1
      %p121 = scmp.eq.s32.totalorder %s20, 1
      %p122 = scmp.ne.s32.totalorder %s117, %s119
      %p123 = scmp.eq.s32.totalorder %s20, 0
      %p124 = por %p122, %p123
      %p125 = scmp.ne.s32.totalorder %s117, %s119
      %p126 = scmp.eq.s32.totalorder %s25, 1
      %p127 = por %p125, %p126
      %p128 = scmp.ne.s32.totalorder %s119, %s120
      %p129 = scmp.eq.s32.totalorder %s25, 0
      %p130 = por %p128, %p129
      %p131 = scmp.ne.s32.totalorder %s119, %s120
      %p132 = scmp.eq.s32.totalorder %s26, 1
      %p133 = por %p131, %p132
      %p135 = scmp.ne.s32.totalorder %s120, %s134
      %p136 = scmp.eq.s32.totalorder %s26, 0
      %p137 = por %p135, %p136
      %s139 = sadd.s32 %s138, 1
      %p142 = scmp.eq.s32.totalorder %s20, 1
      %p143 = scmp.ne.s32.totalorder %s138, %s140
      %p144 = scmp.eq.s32.totalorder %s20, 0
      %p145 = por %p143, %p144
      %p146 = scmp.ne.s32.totalorder %s138, %s140
      %p147 = scmp.eq.s32.totalorder %s25, 1
      %p148 = por %p146, %p147
      %p149 = scmp.ne.s32.totalorder %s140, %s141
      %p150 = scmp.eq.s32.totalorder %s25, 0
      %p151 = por %p149, %p150
      %p152 = scmp.ne.s32.totalorder %s140, %s141
      %p153 = scmp.eq.s32.totalorder %s26, 1
      %p154 = por %p152, %p153
      %p156 = scmp.ne.s32.totalorder %s141, %s155
      %p157 = scmp.eq.s32.totalorder %s26, 0
      %p158 = por %p156, %p157
      %s160 = sadd.s32 %s159, 1
      %p163 = scmp.eq.s32.totalorder %s20, 1
      %p164 = scmp.ne.s32.totalorder %s159, %s161
      %p165 = scmp.eq.s32.totalorder %s20, 0
      %p166 = por %p164, %p165
      %p167 = scmp.ne.s32.totalorder %s159, %s161
      %p168 = scmp.eq.s32.totalorder %s25, 1
      %p169 = por %p167, %p168
      %p170 = scmp.ne.s32.totalorder %s161, %s162
      %p171 = scmp.eq.s32.totalorder %s25, 0
      %p172 = por %p170, %p171
      %p173 = scmp.ne.s32.totalorder %s161, %s162
      %p174 = scmp.eq.s32.totalorder %s26, 1
      %p175 = por %p173, %p174
      %p177 = scmp.ne.s32.totalorder %s162, %s176
      %p178 = scmp.eq.s32.totalorder %s26, 0
      %p179 = por %p177, %p178
      %s181 = sadd.s32 %s180, 1
      %p184 = scmp.eq.s32.totalorder %s20, 1
      %p185 = scmp.ne.s32.totalorder %s180, %s182
      %p186 = scmp.eq.s32.totalorder %s20, 0
      %p187 = por %p185, %p186
      %p188 = scmp.ne.s32.totalorder %s180, %s182
      %p189 = scmp.eq.s32.totalorder %s25, 1
      %p190 = por %p188, %p189
      %p191 = scmp.ne.s32.totalorder %s182, %s183
      %p192 = scmp.eq.s32.totalorder %s25, 0
      %p193 = por %p191, %p192
      %p194 = scmp.ne.s32.totalorder %s182, %s183
      %p195 = scmp.eq.s32.totalorder %s26, 1
      %p196 = por %p194, %p195
      %p198 = scmp.ne.s32.totalorder %s183, %s197
      %p199 = scmp.eq.s32.totalorder %s26, 0
      %p200 = por %p198, %p199
      %s202 = sadd.s32 %s201, 1
      %p205 = scmp.eq.s32.totalorder %s20, 1
      %p206 = scmp.ne.s32.totalorder %s201, %s203
      %p207 = scmp.eq.s32.totalorder %s20, 0
      %p208 = por %p206, %p207
      %p209 = scmp.ne.s32.totalorder %s201, %s203
      %p210 = scmp.eq.s32.totalorder %s25, 1
      %p211 = por %p209, %p210
      %p212 = scmp.ne.s32.totalorder %s203, %s204
      %p213 = scmp.eq.s32.totalorder %s25, 0
      %p214 = por %p212, %p213
      %p215 = scmp.ne.s32.totalorder %s203, %s204
      %p216 = scmp.eq.s32.totalorder %s26, 1
      %p217 = por %p215, %p216
      %p219 = scmp.ne.s32.totalorder %s204, %s218
      %p220 = scmp.eq.s32.totalorder %s26, 0
      %p221 = por %p219, %p220
      %s223 = sadd.s32 %s222, 1
      %p226 = scmp.eq.s32.totalorder %s20, 1
      %p227 = scmp.ne.s32.totalorder %s222, %s224
      %p228 = scmp.eq.s32.totalorder %s20, 0
      %p229 = por %p227, %p228
      %p230 = scmp.ne.s32.totalorder %s222, %s224
      %p231 = scmp.eq.s32.totalorder %s25, 1
      %p232 = por %p230, %p231
      %p233 = scmp.ne.s32.totalorder %s224, %s225
      %p234 = scmp.eq.s32.totalorder %s25, 0
      %p235 = por %p233, %p234
      %p236 = scmp.ne.s32.totalorder %s224, %s225
      %p237 = scmp.eq.s32.totalorder %s26, 1
      %p238 = por %p236, %p237
      %p240 = scmp.ne.s32.totalorder %s225, %s239
      %p241 = scmp.eq.s32.totalorder %s26, 0
      %p242 = por %p240, %p241
      %s244 = sadd.s32 %s243, 1
      %p247 = scmp.eq.s32.totalorder %s20, 1
      %p248 = scmp.ne.s32.totalorder %s243, %s245
      %p249 = scmp.eq.s32.totalorder %s20, 0
      %p250 = por %p248, %p249
      %p251 = scmp.ne.s32.totalorder %s243, %s245
      %p252 = scmp.eq.s32.totalorder %s25, 1
      %p253 = por %p251, %p252
      %p254 = scmp.ne.s32.totalorder %s245, %s246
      %p255 = scmp.eq.s32.totalorder %s25, 0
      %p256 = por %p254, %p255
      %p257 = scmp.ne.s32.totalorder %s245, %s246
      %p258 = scmp.eq.s32.totalorder %s26, 1
      %p259 = por %p257, %p258
      %p261 = scmp.ne.s32.totalorder %s246, %s260
      %p262 = scmp.eq.s32.totalorder %s26, 0
      %p263 = por %p261, %p262
      %s264 = ssub.s32 %s20, %s27
      %p265 = scmp.eq.s32.totalorder %s264, 0
      %s267 = sadd.s32 %s266, 1
      %s268 = scalar_select %p265, %s266, %s267
      %p271 = pneg %p265
      %p272 = scmp.eq.s32.totalorder %s20, 1
      %p273 = por %p271, %p272
      %p274 = scmp.ne.s32.totalorder %s266, %s269
      %p275 = scmp.eq.s32.totalorder %s20, 0
      %p276 = por %p274, %p275
      %p277 = scmp.ne.s32.totalorder %s266, %s269
      %p278 = scmp.eq.s32.totalorder %s25, 1
      %p279 = por %p277, %p278
      %p280 = scmp.ne.s32.totalorder %s269, %s270
      %p281 = scmp.eq.s32.totalorder %s25, 0
      %p282 = por %p280, %p281
      %p283 = scmp.ne.s32.totalorder %s269, %s270
      %p284 = scmp.eq.s32.totalorder %s26, 1
      %p285 = por %p283, %p284
      %p287 = scmp.ne.s32.totalorder %s270, %s286
      %p288 = scmp.eq.s32.totalorder %s26, 0
      %p289 = por %p287, %p288
      %p290 = scmp.le.s32.totalorder 1, %s20
      %p291 = scmp.lt.s32.totalorder %s20, 3
      %p292 = pnand %p290, %p291
      %p293 = pneg %p292
      // Predicated region
      $region9: #{tpu_custom_call.1} parent=5 // pred_check
        _
      $region10: #{tpu_custom_call.1} parent=5 // pred_check_branch
        %295 = sbr.rel (%p292) target = $region12
      $region11: #{tpu_custom_call.1} parent=5 // pred_region
        %s296 = ssub.s32 %s20, 1
        // Predicated region
        $region13: #{tpu_custom_call.1} parent=11 // pred_check
          %p297 = pneg %p67
        $region14: #{tpu_custom_call.1} parent=11 // pred_check_branch
          %299 = sbr.rel (%p297) target = $region16
        $region15: #{tpu_custom_call.1} parent=11 // pred_region
          _
        $region16: #{tpu_custom_call.1} parent=11 // pred_fallthru
          _
        // Predicated region
        $region17: #{tpu_custom_call.1} parent=11 // pred_check
          %p300 = pneg %p88
        $region18: #{tpu_custom_call.1} parent=11 // pred_check_branch
          %302 = sbr.rel (%p300) target = $region20
        $region19: #{tpu_custom_call.1} parent=11 // pred_region
          _
        $region20: #{tpu_custom_call.1} parent=11 // pred_fallthru
          _
        // Predicated region
        $region21: #{tpu_custom_call.1} parent=11 // pred_check
          %p303 = pneg %p109
        $region22: #{tpu_custom_call.1} parent=11 // pred_check_branch
          %305 = sbr.rel (%p303) target = $region24
        $region23: #{tpu_custom_call.1} parent=11 // pred_region
          _
        $region24: #{tpu_custom_call.1} parent=11 // pred_fallthru
          _
        // Predicated region
        $region25: #{tpu_custom_call.1} parent=11 // pred_check
          %p306 = pneg %p130
        $region26: #{tpu_custom_call.1} parent=11 // pred_check_branch
          %308 = sbr.rel (%p306) target = $region28
        $region27: #{tpu_custom_call.1} parent=11 // pred_region
          _
        $region28: #{tpu_custom_call.1} parent=11 // pred_fallthru
          _
        // Predicated region
        $region29: #{tpu_custom_call.1} parent=11 // pred_check
          %p309 = pneg %p151
        $region30: #{tpu_custom_call.1} parent=11 // pred_check_branch
          %311 = sbr.rel (%p309) target = $region32
        $region31: #{tpu_custom_call.1} parent=11 // pred_region
          _
        $region32: #{tpu_custom_call.1} parent=11 // pred_fallthru
          _
        // Predicated region
        $region33: #{tpu_custom_call.1} parent=11 // pred_check
          %p312 = pneg %p172
        $region34: #{tpu_custom_call.1} parent=11 // pred_check_branch
          %314 = sbr.rel (%p312) target = $region36
        $region35: #{tpu_custom_call.1} parent=11 // pred_region
          _
        $region36: #{tpu_custom_call.1} parent=11 // pred_fallthru
          _
        // Predicated region
        $region37: #{tpu_custom_call.1} parent=11 // pred_check
          %p315 = pneg %p193
        $region38: #{tpu_custom_call.1} parent=11 // pred_check_branch
          %317 = sbr.rel (%p315) target = $region40
        $region39: #{tpu_custom_call.1} parent=11 // pred_region
          _
        $region40: #{tpu_custom_call.1} parent=11 // pred_fallthru
          _
        // Predicated region
        $region41: #{tpu_custom_call.1} parent=11 // pred_check
          %p318 = pneg %p214
        $region42: #{tpu_custom_call.1} parent=11 // pred_check_branch
          %320 = sbr.rel (%p318) target = $region44
        $region43: #{tpu_custom_call.1} parent=11 // pred_region
          _
        $region44: #{tpu_custom_call.1} parent=11 // pred_fallthru
          _
        // Predicated region
        $region45: #{tpu_custom_call.1} parent=11 // pred_check
          %p321 = pneg %p235
        $region46: #{tpu_custom_call.1} parent=11 // pred_check_branch
          %323 = sbr.rel (%p321) target = $region48
        $region47: #{tpu_custom_call.1} parent=11 // pred_region
          _
        $region48: #{tpu_custom_call.1} parent=11 // pred_fallthru
          _
        // Predicated region
        $region49: #{tpu_custom_call.1} parent=11 // pred_check
          %p324 = pneg %p256
        $region50: #{tpu_custom_call.1} parent=11 // pred_check_branch
          %326 = sbr.rel (%p324) target = $region52
        $region51: #{tpu_custom_call.1} parent=11 // pred_region
          _
        $region52: #{tpu_custom_call.1} parent=11 // pred_fallthru
          _
      $region12: #{tpu_custom_call.1} parent=5 // pred_fallthru
        _
      %p327 = scmp.lt.s32.totalorder %s20, 2
      // Predicated region
      $region53: #{tpu_custom_call.1} parent=5 // pred_check
        %p328 = pneg %p327
      $region54: #{tpu_custom_call.1} parent=5 // pred_check_branch
        %330 = sbr.rel (%p328) target = $region56
      $region55: #{tpu_custom_call.1} parent=5 // pred_region
        // Predicated region
        $region57: #{tpu_custom_call.1} parent=55 // pred_check
          %p331 = pneg %p40
        $region58: #{tpu_custom_call.1} parent=55 // pred_check_branch
          %333 = sbr.rel (%p331) target = $region60
        $region59: #{tpu_custom_call.1} parent=55 // pred_region
          %p334 = scmp.lt.s32.totalorder %s20, 1
          %s335 = scalar_select %p334, %s20, 1
          %s336 = smul.addr %s335, 8
          %s337 = scalar_lea.vmem %s0, %s336
        $region60: #{tpu_custom_call.1} parent=55 // pred_fallthru
          _
      $region56: #{tpu_custom_call.1} parent=5 // pred_fallthru
        _
      %p338 = scmp.le.s32.totalorder 1, %s20
      %p339 = scmp.lt.s32.totalorder %s20, 3
      %p340 = pnand %p338, %p339
      %p341 = pneg %p340
      // Predicated region
      $region61: #{tpu_custom_call.1} parent=5 // pred_check
        _
      $region62: #{tpu_custom_call.1} parent=5 // pred_check_branch
        %343 = sbr.rel (%p340) target = $region64
      $region63: #{tpu_custom_call.1} parent=5 // pred_region
        %s344 = ssub.s32 %s20, 1
        %p345 = scmp.lt.s32.totalorder %s25, 1
        %s346 = scalar_select %p345, %s25, 1
        %s347 = smul.addr %s346, 8
        %s348 = scalar_lea.vmem %s0, %s347
        %p349 = pneg %p46
        %p350 = pneg %p43
        %p351 = pneg %p67
        %p352 = pneg %p64
        %p353 = pneg %p88
        %p354 = pneg %p85
        %p355 = pneg %p109
        %p356 = pneg %p106
        %p357 = pneg %p130
        %p358 = pneg %p127
        %p359 = pneg %p151
        %p360 = pneg %p148
        %p361 = pneg %p172
        %p362 = pneg %p169
        %p363 = pneg %p193
        %p364 = pneg %p190
        %p365 = pneg %p214
        %p366 = pneg %p211
        %p367 = pneg %p235
        %p368 = pneg %p232
        %p369 = pneg %p256
        %p370 = pneg %p253
        %p371 = pneg %p282
        %p372 = pneg %p279
        %s373 = sand.u32 %s269, 1
        %s374 = scalar_lea.sflag [#allocation3], %s373
        %s375 = sand.u32 %s269, 1
        %s376 = smul.addr %s375, 8
        %s377 = scalar_lea.vmem [#allocation2], %s376
        %p378 = scmp.lt.s32.totalorder %s25, 1
        %s379 = scalar_select %p378, %s25, 1
        %s380 = smul.addr %s379, 8
        %s381 = scalar_lea.vmem %s0, %s380
        %v382 = vld [vmem:[%s381] sm:$0xff]
        %v383 = vld [vmem:[%s1] sm:$0xff]
        %v384 = vld [vmem:[%s1 + $0x8] sm:$0xff]
        %v385 = vld [vmem:[%s1 + $0x10] sm:$0xff]
        %v386 = vld [vmem:[%s1 + $0x18] sm:$0xff]
        %v387 = vld [vmem:[%s2] sm:$0x1]
        %v388 = vmul.f32 %v382, %v382
        %vm389 = vcmask 261120
        %v390 = vsel %vm389, %v388, 0.0
        %391 = vadd.xlane.f32.xlu0 %v390
        %v392 = vpop.xlane.xlu0 %391
        %v393 = vrcp.pop 32.0
        %v394 = vmul.f32 32.0, %v393
        %v395 = vsub.f32 1.0, %v394
        %v396 = vmul.f32 %v393, %v395
        %v397 = vadd.f32 %v393, %v396
        %vm398 = vweird.f32 %v393
        %v399 = vsel %vm398, %v393, %v397
        %v400 = vmul.f32 %v392, %v399
        %v401 = vadd.f32 %v400, 1e-06
        %v402 = vrsqrt.pop %v401
        %v403 = vmul.f32 %v402, %v401
        %v404 = vmul.f32 %v403, %v402
        %v405 = vmul.f32 0.5, %v404
        %v406 = vsub.f32 1.5, %v405
        %v407 = vmul.f32 %v402, %v406
        %vm408 = vweird.f32 %v401
        %vm409 = vweird.f32 %v402
        %vm410 = vmor %vm408, %vm409
        %v411 = vsel %vm410, %v402, %v407
        %v412 = vmul.f32 %v382, %v411
        %v414 = vperm.slane %v387, 0
        %v416 = vmul.f32 %v412, %v414
        %v417 = vld [vmem:[%s3] sm:$0xff]
        %v418 = vld [vmem:[%s3 + $0x8] sm:$0xff]
        %v419 = vld [vmem:[%s3 + $0x10] sm:$0xff]
        %v420 = vld [vmem:[%s3 + $0x18] sm:$0xff]
        %v421 = vld [vmem:[%s3 + $0x20] sm:$0xff]
        %v422 = vld [vmem:[%s3 + $0x28] sm:$0xff]
        %v423 = vld [vmem:[%s3 + $0x30] sm:$0xff]
        %v424 = vld [vmem:[%s3 + $0x38] sm:$0xff]
        %v425 = vld [vmem:[%s3 + $0x40] sm:$0xff]
        %v426 = vld [vmem:[%s3 + $0x48] sm:$0xff]
        %v427 = vld [vmem:[%s3 + $0x50] sm:$0xff]
        %v428 = vld [vmem:[%s3 + $0x58] sm:$0xff]
        %v429 = vld [vmem:[%s3 + $0x60] sm:$0xff]
        %v430 = vld [vmem:[%s3 + $0x68] sm:$0xff]
        %v431 = vld [vmem:[%s3 + $0x70] sm:$0xff]
        %v432 = vld [vmem:[%s3 + $0x78] sm:$0xff]
        %v434 = vsel %vm389, %v416, 0
        %436 = vmatpush.msra.mxu0 0.0
        %437 = vmatpush.msra.mxu0 0.0
        %438 = vmatpush.msra.mxu0 0.0
        %439 = vmatpush.msra.mxu0 0.0
        %440 = vmatpush.msra.mxu0 0.0
        %441 = vmatpush.msra.mxu0 0.0
        %442 = vmatpush.msra.mxu0 0.0
        %443 = vmatpush.msra.mxu0 0.0
        %444 = vmatpush.msra.mxu0 0.0
        %445 = vmatpush.msra.mxu0 0.0
        %446 = vmatpush.msra.mxu0 0.0
        %447 = vmatpush.msra.mxu0 0.0
        %448 = vmatpush.msra.mxu0 %v420
        %449 = vmatpush.msra.mxu0 %v419
        %450 = vmatpush.msra.mxu0 %v418
        %451 = vmatpush.msra.mxu0 %v417
        %452 = vmatmul.f32.gmra.mxu0 %v434
        %v453 = vpop.f32.mrf.mxu0
        %v454 = vadd.f32 0.0, %v453
        %455 = vdwg.mxu0
        %456 = vmatpush.msra.mxu0 0.0
        %457 = vmatpush.msra.mxu0 0.0
        %458 = vmatpush.msra.mxu0 0.0
        %459 = vmatpush.msra.mxu0 0.0
        %460 = vmatpush.msra.mxu0 0.0
        %461 = vmatpush.msra.mxu0 0.0
        %462 = vmatpush.msra.mxu0 0.0
        %463 = vmatpush.msra.mxu0 0.0
        %464 = vmatpush.msra.mxu0 0.0
        %465 = vmatpush.msra.mxu0 0.0
        %466 = vmatpush.msra.mxu0 0.0
        %467 = vmatpush.msra.mxu0 0.0
        %468 = vmatpush.msra.mxu0 %v424
        %469 = vmatpush.msra.mxu0 %v423
        %470 = vmatpush.msra.mxu0 %v422
        %471 = vmatpush.msra.mxu0 %v421
        %472 = vmatmul.f32.gmra.mxu0 %v434
        %v473 = vpop.f32.mrf.mxu0
        %v474 = vadd.f32 0.0, %v473
        %475 = vdwg.mxu0
        %476 = vmatpush.msra.mxu0 0.0
        %477 = vmatpush.msra.mxu0 0.0
        %478 = vmatpush.msra.mxu0 0.0
        %479 = vmatpush.msra.mxu0 0.0
        %480 = vmatpush.msra.mxu0 0.0
        %481 = vmatpush.msra.mxu0 0.0
        %482 = vmatpush.msra.mxu0 0.0
        %483 = vmatpush.msra.mxu0 0.0
        %484 = vmatpush.msra.mxu0 0.0
        %485 = vmatpush.msra.mxu0 0.0
        %486 = vmatpush.msra.mxu0 0.0
        %487 = vmatpush.msra.mxu0 0.0
        %488 = vmatpush.msra.mxu0 %v428
        %489 = vmatpush.msra.mxu0 %v427
        %490 = vmatpush.msra.mxu0 %v426
        %491 = vmatpush.msra.mxu0 %v425
        %492 = vmatmul.f32.gmra.mxu0 %v434
        %v493 = vpop.f32.mrf.mxu0
        %v494 = vadd.f32 0.0, %v493
        %495 = vdwg.mxu0
        %496 = vmatpush.msra.mxu0 0.0
        %497 = vmatpush.msra.mxu0 0.0
        %498 = vmatpush.msra.mxu0 0.0
        %499 = vmatpush.msra.mxu0 0.0
        %500 = vmatpush.msra.mxu0 0.0
        %501 = vmatpush.msra.mxu0 0.0
        %502 = vmatpush.msra.mxu0 0.0
        %503 = vmatpush.msra.mxu0 0.0
        %504 = vmatpush.msra.mxu0 0.0
        %505 = vmatpush.msra.mxu0 0.0
        %506 = vmatpush.msra.mxu0 0.0
        %507 = vmatpush.msra.mxu0 0.0
        %508 = vmatpush.msra.mxu0 %v432
        %509 = vmatpush.msra.mxu0 %v431
        %510 = vmatpush.msra.mxu0 %v430
        %511 = vmatpush.msra.mxu0 %v429
        %512 = vmatmul.f32.gmra.mxu0 %v434
        %v513 = vpop.f32.mrf.mxu0
        %v514 = vadd.f32 0.0, %v513
        %515 = vdwg.mxu0
        %v516 = vld [vmem:[%s4] sm:$0xff]
        %v517 = vld [vmem:[%s4 + $0x8] sm:$0xff]
        %v518 = vld [vmem:[%s4 + $0x10] sm:$0xff]
        %v519 = vld [vmem:[%s4 + $0x18] sm:$0xff]
        %v520 = vld [vmem:[%s4 + $0x20] sm:$0xff]
        %v521 = vld [vmem:[%s4 + $0x28] sm:$0xff]
        %v522 = vld [vmem:[%s4 + $0x30] sm:$0xff]
        %v523 = vld [vmem:[%s4 + $0x38] sm:$0xff]
        %v524 = vld [vmem:[%s4 + $0x40] sm:$0xff]
        %v525 = vld [vmem:[%s4 + $0x48] sm:$0xff]
        %v526 = vld [vmem:[%s4 + $0x50] sm:$0xff]
        %v527 = vld [vmem:[%s4 + $0x58] sm:$0xff]
        %v528 = vld [vmem:[%s4 + $0x60] sm:$0xff]
        %v529 = vld [vmem:[%s4 + $0x68] sm:$0xff]
        %v530 = vld [vmem:[%s4 + $0x70] sm:$0xff]
        %v531 = vld [vmem:[%s4 + $0x78] sm:$0xff]
        %532 = vmatpush.msra.mxu0 0.0
        %533 = vmatpush.msra.mxu0 0.0
        %534 = vmatpush.msra.mxu0 0.0
        %535 = vmatpush.msra.mxu0 0.0
        %536 = vmatpush.msra.mxu0 0.0
        %537 = vmatpush.msra.mxu0 0.0
        %538 = vmatpush.msra.mxu0 0.0
        %539 = vmatpush.msra.mxu0 0.0
        %540 = vmatpush.msra.mxu0 0.0
        %541 = vmatpush.msra.mxu0 0.0
        %542 = vmatpush.msra.mxu0 0.0
        %543 = vmatpush.msra.mxu0 0.0
        %544 = vmatpush.msra.mxu0 %v519
        %545 = vmatpush.msra.mxu0 %v518
        %546 = vmatpush.msra.mxu0 %v517
        %547 = vmatpush.msra.mxu0 %v516
        %548 = vmatmul.f32.gmra.mxu0 %v434
        %v549 = vpop.f32.mrf.mxu0
        %v550 = vadd.f32 0.0, %v549
        %551 = vdwg.mxu0
        %552 = vmatpush.msra.mxu0 0.0
        %553 = vmatpush.msra.mxu0 0.0
        %554 = vmatpush.msra.mxu0 0.0
        %555 = vmatpush.msra.mxu0 0.0
        %556 = vmatpush.msra.mxu0 0.0
        %557 = vmatpush.msra.mxu0 0.0
        %558 = vmatpush.msra.mxu0 0.0
        %559 = vmatpush.msra.mxu0 0.0
        %560 = vmatpush.msra.mxu0 0.0
        %561 = vmatpush.msra.mxu0 0.0
        %562 = vmatpush.msra.mxu0 0.0
        %563 = vmatpush.msra.mxu0 0.0
        %564 = vmatpush.msra.mxu0 %v523
        %565 = vmatpush.msra.mxu0 %v522
        %566 = vmatpush.msra.mxu0 %v521
        %567 = vmatpush.msra.mxu0 %v520
        %568 = vmatmul.f32.gmra.mxu0 %v434
        %v569 = vpop.f32.mrf.mxu0
        %v570 = vadd.f32 0.0, %v569
        %571 = vdwg.mxu0
        %572 = vmatpush.msra.mxu0 0.0
        %573 = vmatpush.msra.mxu0 0.0
        %574 = vmatpush.msra.mxu0 0.0
        %575 = vmatpush.msra.mxu0 0.0
        %576 = vmatpush.msra.mxu0 0.0
        %577 = vmatpush.msra.mxu0 0.0
        %578 = vmatpush.msra.mxu0 0.0
        %579 = vmatpush.msra.mxu0 0.0
        %580 = vmatpush.msra.mxu0 0.0
        %581 = vmatpush.msra.mxu0 0.0
        %582 = vmatpush.msra.mxu0 0.0
        %583 = vmatpush.msra.mxu0 0.0
        %584 = vmatpush.msra.mxu0 %v527
        %585 = vmatpush.msra.mxu0 %v526
        %586 = vmatpush.msra.mxu0 %v525
        %587 = vmatpush.msra.mxu0 %v524
        %588 = vmatmul.f32.gmra.mxu0 %v434
        %v589 = vpop.f32.mrf.mxu0
        %v590 = vadd.f32 0.0, %v589
        %591 = vdwg.mxu0
        %592 = vmatpush.msra.mxu0 0.0
        %593 = vmatpush.msra.mxu0 0.0
        %594 = vmatpush.msra.mxu0 0.0
        %595 = vmatpush.msra.mxu0 0.0
        %596 = vmatpush.msra.mxu0 0.0
        %597 = vmatpush.msra.mxu0 0.0
        %598 = vmatpush.msra.mxu0 0.0
        %599 = vmatpush.msra.mxu0 0.0
        %600 = vmatpush.msra.mxu0 0.0
        %601 = vmatpush.msra.mxu0 0.0
        %602 = vmatpush.msra.mxu0 0.0
        %603 = vmatpush.msra.mxu0 0.0
        %604 = vmatpush.msra.mxu0 %v531
        %605 = vmatpush.msra.mxu0 %v530
        %606 = vmatpush.msra.mxu0 %v529
        %607 = vmatpush.msra.mxu0 %v528
        %608 = vmatmul.f32.gmra.mxu0 %v434
        %v609 = vpop.f32.mrf.mxu0
        %v610 = vadd.f32 0.0, %v609
        %611 = vdwg.mxu0
        %v612 = vld [vmem:[%s5] sm:$0xff]
        %v613 = vld [vmem:[%s5 + $0x8] sm:$0xff]
        %v614 = vld [vmem:[%s5 + $0x10] sm:$0xff]
        %v615 = vld [vmem:[%s5 + $0x18] sm:$0xff]
        %v616 = vld [vmem:[%s5 + $0x20] sm:$0xff]
        %v617 = vld [vmem:[%s5 + $0x28] sm:$0xff]
        %v618 = vld [vmem:[%s5 + $0x30] sm:$0xff]
        %v619 = vld [vmem:[%s5 + $0x38] sm:$0xff]
        %v620 = vld [vmem:[%s5 + $0x40] sm:$0xff]
        %v621 = vld [vmem:[%s5 + $0x48] sm:$0xff]
        %v622 = vld [vmem:[%s5 + $0x50] sm:$0xff]
        %v623 = vld [vmem:[%s5 + $0x58] sm:$0xff]
        %v624 = vld [vmem:[%s5 + $0x60] sm:$0xff]
        %v625 = vld [vmem:[%s5 + $0x68] sm:$0xff]
        %v626 = vld [vmem:[%s5 + $0x70] sm:$0xff]
        %v627 = vld [vmem:[%s5 + $0x78] sm:$0xff]
        %628 = vmatpush.msra.mxu0 0.0
        %629 = vmatpush.msra.mxu0 0.0
        %630 = vmatpush.msra.mxu0 0.0
        %631 = vmatpush.msra.mxu0 0.0
        %632 = vmatpush.msra.mxu0 0.0
        %633 = vmatpush.msra.mxu0 0.0
        %634 = vmatpush.msra.mxu0 0.0
        %635 = vmatpush.msra.mxu0 0.0
        %636 = vmatpush.msra.mxu0 0.0
        %637 = vmatpush.msra.mxu0 0.0
        %638 = vmatpush.msra.mxu0 0.0
        %639 = vmatpush.msra.mxu0 0.0
        %640 = vmatpush.msra.mxu0 %v615
        %641 = vmatpush.msra.mxu0 %v614
        %642 = vmatpush.msra.mxu0 %v613
        %643 = vmatpush.msra.mxu0 %v612
        %644 = vmatmul.f32.gmra.mxu0 %v434
        %v645 = vpop.f32.mrf.mxu0
        %v646 = vadd.f32 0.0, %v645
        %647 = vdwg.mxu0
        %648 = vmatpush.msra.mxu0 0.0
        %649 = vmatpush.msra.mxu0 0.0
        %650 = vmatpush.msra.mxu0 0.0
        %651 = vmatpush.msra.mxu0 0.0
        %652 = vmatpush.msra.mxu0 0.0
        %653 = vmatpush.msra.mxu0 0.0
        %654 = vmatpush.msra.mxu0 0.0
        %655 = vmatpush.msra.mxu0 0.0
        %656 = vmatpush.msra.mxu0 0.0
        %657 = vmatpush.msra.mxu0 0.0
        %658 = vmatpush.msra.mxu0 0.0
        %659 = vmatpush.msra.mxu0 0.0
        %660 = vmatpush.msra.mxu0 %v619
        %661 = vmatpush.msra.mxu0 %v618
        %662 = vmatpush.msra.mxu0 %v617
        %663 = vmatpush.msra.mxu0 %v616
        %664 = vmatmul.f32.gmra.mxu0 %v434
        %v665 = vpop.f32.mrf.mxu0
        %v666 = vadd.f32 0.0, %v665
        %667 = vdwg.mxu0
        %668 = vmatpush.msra.mxu0 0.0
        %669 = vmatpush.msra.mxu0 0.0
        %670 = vmatpush.msra.mxu0 0.0
        %671 = vmatpush.msra.mxu0 0.0
        %672 = vmatpush.msra.mxu0 0.0
        %673 = vmatpush.msra.mxu0 0.0
        %674 = vmatpush.msra.mxu0 0.0
        %675 = vmatpush.msra.mxu0 0.0
        %676 = vmatpush.msra.mxu0 0.0
        %677 = vmatpush.msra.mxu0 0.0
        %678 = vmatpush.msra.mxu0 0.0
        %679 = vmatpush.msra.mxu0 0.0
        %680 = vmatpush.msra.mxu0 %v623
        %681 = vmatpush.msra.mxu0 %v622
        %682 = vmatpush.msra.mxu0 %v621
        %683 = vmatpush.msra.mxu0 %v620
        %684 = vmatmul.f32.gmra.mxu0 %v434
        %v685 = vpop.f32.mrf.mxu0
        %v686 = vadd.f32 0.0, %v685
        %687 = vdwg.mxu0
        %688 = vmatpush.msra.mxu0 0.0
        %689 = vmatpush.msra.mxu0 0.0
        %690 = vmatpush.msra.mxu0 0.0
        %691 = vmatpush.msra.mxu0 0.0
        %692 = vmatpush.msra.mxu0 0.0
        %693 = vmatpush.msra.mxu0 0.0
        %694 = vmatpush.msra.mxu0 0.0
        %695 = vmatpush.msra.mxu0 0.0
        %696 = vmatpush.msra.mxu0 0.0
        %697 = vmatpush.msra.mxu0 0.0
        %698 = vmatpush.msra.mxu0 0.0
        %699 = vmatpush.msra.mxu0 0.0
        %700 = vmatpush.msra.mxu0 %v627
        %701 = vmatpush.msra.mxu0 %v626
        %702 = vmatpush.msra.mxu0 %v625
        %703 = vmatpush.msra.mxu0 %v624
        %704 = vmatmul.f32.gmra.mxu0 %v434
        %v705 = vpop.f32.mrf.mxu0
        %v706 = vadd.f32 0.0, %v705
        %707 = vdwg.mxu0
        %vm708 = vcmask 64512
        %v710 = vsel %vm708, %v454, 0
        %v713 = vsel %vm708, %v550, 0
        %715 = vmatpush.xpose.msra.mxu0 0.0
        %716 = vmatpush.xpose.msra.mxu0 0.0
        %717 = vmatpush.xpose.msra.mxu0 0.0
        %718 = vmatpush.xpose.msra.mxu0 0.0
        %719 = vmatpush.xpose.msra.mxu0 0.0
        %720 = vmatpush.xpose.msra.mxu0 0.0
        %721 = vmatpush.xpose.msra.mxu0 0.0
        %722 = vmatpush.xpose.msra.mxu0 0.0
        %723 = vmatpush.xpose.msra.mxu0 0.0
        %724 = vmatpush.xpose.msra.mxu0 0.0
        %725 = vmatpush.xpose.msra.mxu0 0.0
        %726 = vmatpush.xpose.msra.mxu0 0.0
        %727 = vmatpush.xpose.msra.mxu0 0.0
        %728 = vmatpush.xpose.msra.mxu0 0.0
        %729 = vmatpush.xpose.msra.mxu0 0.0
        %730 = vmatpush.xpose.msra.mxu0 %v713
        %731 = vmatmul.f32.gmra.mxu0 %v710
        %v732 = vpop.f32.mrf.mxu0
        %v733 = vadd.f32 %v383, %v732
        %734 = vdwg.mxu0
        %v736 = vsel %vm708, %v474, 0
        %v739 = vsel %vm708, %v570, 0
        %741 = vmatpush.xpose.msra.mxu0 0.0
        %742 = vmatpush.xpose.msra.mxu0 0.0
        %743 = vmatpush.xpose.msra.mxu0 0.0
        %744 = vmatpush.xpose.msra.mxu0 0.0
        %745 = vmatpush.xpose.msra.mxu0 0.0
        %746 = vmatpush.xpose.msra.mxu0 0.0
        %747 = vmatpush.xpose.msra.mxu0 0.0
        %748 = vmatpush.xpose.msra.mxu0 0.0
        %749 = vmatpush.xpose.msra.mxu0 0.0
        %750 = vmatpush.xpose.msra.mxu0 0.0
        %751 = vmatpush.xpose.msra.mxu0 0.0
        %752 = vmatpush.xpose.msra.mxu0 0.0
        %753 = vmatpush.xpose.msra.mxu0 0.0
        %754 = vmatpush.xpose.msra.mxu0 0.0
        %755 = vmatpush.xpose.msra.mxu0 0.0
        %756 = vmatpush.xpose.msra.mxu0 %v739
        %757 = vmatmul.f32.gmra.mxu0 %v736
        %v758 = vpop.f32.mrf.mxu0
        %v759 = vadd.f32 %v384, %v758
        %760 = vdwg.mxu0
        %v762 = vsel %vm708, %v494, 0
        %v765 = vsel %vm708, %v590, 0
        %767 = vmatpush.xpose.msra.mxu0 0.0
        %768 = vmatpush.xpose.msra.mxu0 0.0
        %769 = vmatpush.xpose.msra.mxu0 0.0
        %770 = vmatpush.xpose.msra.mxu0 0.0
        %771 = vmatpush.xpose.msra.mxu0 0.0
        %772 = vmatpush.xpose.msra.mxu0 0.0
        %773 = vmatpush.xpose.msra.mxu0 0.0
        %774 = vmatpush.xpose.msra.mxu0 0.0
        %775 = vmatpush.xpose.msra.mxu0 0.0
        %776 = vmatpush.xpose.msra.mxu0 0.0
        %777 = vmatpush.xpose.msra.mxu0 0.0
        %778 = vmatpush.xpose.msra.mxu0 0.0
        %779 = vmatpush.xpose.msra.mxu0 0.0
        %780 = vmatpush.xpose.msra.mxu0 0.0
        %781 = vmatpush.xpose.msra.mxu0 0.0
        %782 = vmatpush.xpose.msra.mxu0 %v765
        %783 = vmatmul.f32.gmra.mxu0 %v762
        %v784 = vpop.f32.mrf.mxu0
        %v785 = vadd.f32 %v385, %v784
        %786 = vdwg.mxu0
        %v788 = vsel %vm708, %v514, 0
        %v791 = vsel %vm708, %v610, 0
        %793 = vmatpush.xpose.msra.mxu0 0.0
        %794 = vmatpush.xpose.msra.mxu0 0.0
        %795 = vmatpush.xpose.msra.mxu0 0.0
        %796 = vmatpush.xpose.msra.mxu0 0.0
        %797 = vmatpush.xpose.msra.mxu0 0.0
        %798 = vmatpush.xpose.msra.mxu0 0.0
        %799 = vmatpush.xpose.msra.mxu0 0.0
        %800 = vmatpush.xpose.msra.mxu0 0.0
        %801 = vmatpush.xpose.msra.mxu0 0.0
        %802 = vmatpush.xpose.msra.mxu0 0.0
        %803 = vmatpush.xpose.msra.mxu0 0.0
        %804 = vmatpush.xpose.msra.mxu0 0.0
        %805 = vmatpush.xpose.msra.mxu0 0.0
        %806 = vmatpush.xpose.msra.mxu0 0.0
        %807 = vmatpush.xpose.msra.mxu0 0.0
        %808 = vmatpush.xpose.msra.mxu0 %v791
        %809 = vmatmul.f32.gmra.mxu0 %v788
        %v810 = vpop.f32.mrf.mxu0
        %v811 = vadd.f32 %v386, %v810
        %812 = vdwg.mxu0
        %v813 = vsel %vm708, %v733, -inf
        %814 = vmax.xlane.f32.xlu0 %v813
        %v815 = vpop.xlane.xlu0 %814
        %v816 = vsel %vm708, %v759, -inf
        %817 = vmax.xlane.f32.xlu0 %v816
        %v818 = vpop.xlane.xlu0 %817
        %v819 = vsel %vm708, %v785, -inf
        %820 = vmax.xlane.f32.xlu0 %v819
        %v821 = vpop.xlane.xlu0 %820
        %v822 = vsel %vm708, %v811, -inf
        %823 = vmax.xlane.f32.xlu0 %v822
        %v824 = vpop.xlane.xlu0 %823
        %v825 = vsub.f32 %v733, %v815
        %v826 = vsub.f32 %v759, %v818
        %v827 = vsub.f32 %v785, %v821
        %v828 = vsub.f32 %v811, %v824
        %v829 = vmul.f32 %v825, 1.442695
        %v830 = vpow.pop %v829
        %v831 = vmul.f32 %v826, 1.442695
        %v832 = vpow.pop %v831
        %v833 = vmul.f32 %v827, 1.442695
        %v834 = vpow.pop %v833
        %v835 = vmul.f32 %v828, 1.442695
        %v836 = vpow.pop %v835
        %v837 = vsel %vm708, %v830, 0.0
        %838 = vadd.xlane.f32.xlu0 %v837
        %v839 = vpop.xlane.xlu0 %838
        %v840 = vsel %vm708, %v832, 0.0
        %841 = vadd.xlane.f32.xlu0 %v840
        %v842 = vpop.xlane.xlu0 %841
        %v843 = vsel %vm708, %v834, 0.0
        %844 = vadd.xlane.f32.xlu0 %v843
        %v845 = vpop.xlane.xlu0 %844
        %v846 = vsel %vm708, %v836, 0.0
        %847 = vadd.xlane.f32.xlu0 %v846
        %v848 = vpop.xlane.xlu0 %847
        %v849 = vrcp.pop %v839
        %v850 = vmul.f32 %v839, %v849
        %v851 = vsub.f32 1.0, %v850
        %v852 = vmul.f32 %v849, %v851
        %v853 = vadd.f32 %v849, %v852
        %vm854 = vweird.f32 %v839
        %vm855 = vweird.f32 %v849
        %vm856 = vmor %vm854, %vm855
        %v857 = vsel %vm856, %v849, %v853
        %v858 = vand.u32 2147483647, %v839
        %vm859 = vcmp.eq.f32.partialorder %v858, 8.507059e+37
        %v860 = vand.u32 %v839, 2147483648
        %v861 = vor.u32 1.1754944e-38, %v860
        %v862 = vsel %vm859, %v861, %v857
        %v863 = vrcp.pop %v842
        %v864 = vmul.f32 %v842, %v863
        %v865 = vsub.f32 1.0, %v864
        %v866 = vmul.f32 %v863, %v865
        %v867 = vadd.f32 %v863, %v866
        %vm868 = vweird.f32 %v842
        %vm869 = vweird.f32 %v863
        %vm870 = vmor %vm868, %vm869
        %v871 = vsel %vm870, %v863, %v867
        %v872 = vand.u32 2147483647, %v842
        %vm873 = vcmp.eq.f32.partialorder %v872, 8.507059e+37
        %v874 = vand.u32 %v842, 2147483648
        %v875 = vor.u32 1.1754944e-38, %v874
        %v876 = vsel %vm873, %v875, %v871
        %v877 = vrcp.pop %v845
        %v878 = vmul.f32 %v845, %v877
        %v879 = vsub.f32 1.0, %v878
        %v880 = vmul.f32 %v877, %v879
        %v881 = vadd.f32 %v877, %v880
        %vm882 = vweird.f32 %v845
        %vm883 = vweird.f32 %v877
        %vm884 = vmor %vm882, %vm883
        %v885 = vsel %vm884, %v877, %v881
        %v886 = vand.u32 2147483647, %v845
        %vm887 = vcmp.eq.f32.partialorder %v886, 8.507059e+37
        %v888 = vand.u32 %v845, 2147483648
        %v889 = vor.u32 1.1754944e-38, %v888
        %v890 = vsel %vm887, %v889, %v885
        %v891 = vrcp.pop %v848
        %v892 = vmul.f32 %v848, %v891
        %v893 = vsub.f32 1.0, %v892
        %v894 = vmul.f32 %v891, %v893
        %v895 = vadd.f32 %v891, %v894
        %vm896 = vweird.f32 %v848
        %vm897 = vweird.f32 %v891
        %vm898 = vmor %vm896, %vm897
        %v899 = vsel %vm898, %v891, %v895
        %v900 = vand.u32 2147483647, %v848
        %vm901 = vcmp.eq.f32.partialorder %v900, 8.507059e+37
        %v902 = vand.u32 %v848, 2147483648
        %v903 = vor.u32 1.1754944e-38, %v902
        %v904 = vsel %vm901, %v903, %v899
        %v905 = vmul.f32 %v830, %v862
        %v906 = vmul.f32 %v832, %v876
        %v907 = vmul.f32 %v834, %v890
        %v908 = vmul.f32 %v836, %v904
        %v910 = vsel %vm708, %v905, 0
        %912 = vmatpush.msra.mxu0 0.0
        %913 = vmatpush.msra.mxu0 0.0
        %914 = vmatpush.msra.mxu0 0.0
        %915 = vmatpush.msra.mxu0 0.0
        %916 = vmatpush.msra.mxu0 0.0
        %917 = vmatpush.msra.mxu0 0.0
        %918 = vmatpush.msra.mxu0 0.0
        %919 = vmatpush.msra.mxu0 0.0
        %920 = vmatpush.msra.mxu0 0.0
        %921 = vmatpush.msra.mxu0 0.0
        %922 = vmatpush.msra.mxu0 0.0
        %923 = vmatpush.msra.mxu0 0.0
        %924 = vmatpush.msra.mxu0 0.0
        %925 = vmatpush.msra.mxu0 0.0
        %926 = vmatpush.msra.mxu0 0.0
        %927 = vmatpush.msra.mxu0 %v646
        %928 = vmatmul.f32.gmra.mxu0 %v910
        %v929 = vpop.f32.mrf.mxu0
        %v930 = vadd.f32 0.0, %v929
        %931 = vdwg.mxu0
        %v933 = vsel %vm708, %v906, 0
        %935 = vmatpush.msra.mxu0 0.0
        %936 = vmatpush.msra.mxu0 0.0
        %937 = vmatpush.msra.mxu0 0.0
        %938 = vmatpush.msra.mxu0 0.0
        %939 = vmatpush.msra.mxu0 0.0
        %940 = vmatpush.msra.mxu0 0.0
        %941 = vmatpush.msra.mxu0 0.0
        %942 = vmatpush.msra.mxu0 0.0
        %943 = vmatpush.msra.mxu0 0.0
        %944 = vmatpush.msra.mxu0 0.0
        %945 = vmatpush.msra.mxu0 0.0
        %946 = vmatpush.msra.mxu0 0.0
        %947 = vmatpush.msra.mxu0 0.0
        %948 = vmatpush.msra.mxu0 0.0
        %949 = vmatpush.msra.mxu0 0.0
        %950 = vmatpush.msra.mxu0 %v666
        %951 = vmatmul.f32.gmra.mxu0 %v933
        %v952 = vpop.f32.mrf.mxu0
        %v953 = vadd.f32 0.0, %v952
        %954 = vdwg.mxu0
        %v956 = vsel %vm708, %v907, 0
        %958 = vmatpush.msra.mxu0 0.0
        %959 = vmatpush.msra.mxu0 0.0
        %960 = vmatpush.msra.mxu0 0.0
        %961 = vmatpush.msra.mxu0 0.0
        %962 = vmatpush.msra.mxu0 0.0
        %963 = vmatpush.msra.mxu0 0.0
        %964 = vmatpush.msra.mxu0 0.0
        %965 = vmatpush.msra.mxu0 0.0
        %966 = vmatpush.msra.mxu0 0.0
        %967 = vmatpush.msra.mxu0 0.0
        %968 = vmatpush.msra.mxu0 0.0
        %969 = vmatpush.msra.mxu0 0.0
        %970 = vmatpush.msra.mxu0 0.0
        %971 = vmatpush.msra.mxu0 0.0
        %972 = vmatpush.msra.mxu0 0.0
        %973 = vmatpush.msra.mxu0 %v686
        %974 = vmatmul.f32.gmra.mxu0 %v956
        %v975 = vpop.f32.mrf.mxu0
        %v976 = vadd.f32 0.0, %v975
        %977 = vdwg.mxu0
        %v979 = vsel %vm708, %v908, 0
        %981 = vmatpush.msra.mxu0 0.0
        %982 = vmatpush.msra.mxu0 0.0
        %983 = vmatpush.msra.mxu0 0.0
        %984 = vmatpush.msra.mxu0 0.0
        %985 = vmatpush.msra.mxu0 0.0
        %986 = vmatpush.msra.mxu0 0.0
        %987 = vmatpush.msra.mxu0 0.0
        %988 = vmatpush.msra.mxu0 0.0
        %989 = vmatpush.msra.mxu0 0.0
        %990 = vmatpush.msra.mxu0 0.0
        %991 = vmatpush.msra.mxu0 0.0
        %992 = vmatpush.msra.mxu0 0.0
        %993 = vmatpush.msra.mxu0 0.0
        %994 = vmatpush.msra.mxu0 0.0
        %995 = vmatpush.msra.mxu0 0.0
        %996 = vmatpush.msra.mxu0 %v706
        %997 = vmatmul.f32.gmra.mxu0 %v979
        %v998 = vpop.f32.mrf.mxu0
        %v999 = vadd.f32 0.0, %v998
        %1000 = vdwg.mxu0
        %v1001 = vld [vmem:[%s6] sm:$0xff]
        %v1002 = vld [vmem:[%s6 + $0x8] sm:$0xff]
        %v1003 = vld [vmem:[%s6 + $0x10] sm:$0xff]
        %v1004 = vld [vmem:[%s6 + $0x18] sm:$0xff]
        %v1006 = vsel %vm708, %v930, 0
        %1008 = vmatpush.msra.mxu0 0.0
        %1009 = vmatpush.msra.mxu0 0.0
        %1010 = vmatpush.msra.mxu0 0.0
        %1011 = vmatpush.msra.mxu0 0.0
        %1012 = vmatpush.msra.mxu0 0.0
        %1013 = vmatpush.msra.mxu0 0.0
        %1014 = vmatpush.msra.mxu0 0.0
        %1015 = vmatpush.msra.mxu0 0.0
        %1016 = vmatpush.msra.mxu0 0.0
        %1017 = vmatpush.msra.mxu0 0.0
        %1018 = vmatpush.msra.mxu0 0.0
        %1019 = vmatpush.msra.mxu0 0.0
        %1020 = vmatpush.msra.mxu0 0.0
        %1021 = vmatpush.msra.mxu0 0.0
        %1022 = vmatpush.msra.mxu0 0.0
        %1023 = vmatpush.msra.mxu0 %v1001
        %1024 = vmatmul.f32.gmra.mxu0 %v1006
        %v1025 = vpop.f32.mrf.mxu0
        %v1026 = vadd.f32 0.0, %v1025
        %1027 = vdwg.mxu0
        %v1029 = vsel %vm708, %v953, 0
        %1031 = vmatpush.msra.mxu0 0.0
        %1032 = vmatpush.msra.mxu0 0.0
        %1033 = vmatpush.msra.mxu0 0.0
        %1034 = vmatpush.msra.mxu0 0.0
        %1035 = vmatpush.msra.mxu0 0.0
        %1036 = vmatpush.msra.mxu0 0.0
        %1037 = vmatpush.msra.mxu0 0.0
        %1038 = vmatpush.msra.mxu0 0.0
        %1039 = vmatpush.msra.mxu0 0.0
        %1040 = vmatpush.msra.mxu0 0.0
        %1041 = vmatpush.msra.mxu0 0.0
        %1042 = vmatpush.msra.mxu0 0.0
        %1043 = vmatpush.msra.mxu0 0.0
        %1044 = vmatpush.msra.mxu0 0.0
        %1045 = vmatpush.msra.mxu0 0.0
        %1046 = vmatpush.msra.mxu0 %v1002
        %1047 = vmatmul.f32.gmra.mxu0 %v1029
        %v1048 = vpop.f32.mrf.mxu0
        %v1049 = vadd.f32 0.0, %v1048
        %1050 = vdwg.mxu0
        %v1052 = vsel %vm708, %v976, 0
        %1054 = vmatpush.msra.mxu0 0.0
        %1055 = vmatpush.msra.mxu0 0.0
        %1056 = vmatpush.msra.mxu0 0.0
        %1057 = vmatpush.msra.mxu0 0.0
        %1058 = vmatpush.msra.mxu0 0.0
        %1059 = vmatpush.msra.mxu0 0.0
        %1060 = vmatpush.msra.mxu0 0.0
        %1061 = vmatpush.msra.mxu0 0.0
        %1062 = vmatpush.msra.mxu0 0.0
        %1063 = vmatpush.msra.mxu0 0.0
        %1064 = vmatpush.msra.mxu0 0.0
        %1065 = vmatpush.msra.mxu0 0.0
        %1066 = vmatpush.msra.mxu0 0.0
        %1067 = vmatpush.msra.mxu0 0.0
        %1068 = vmatpush.msra.mxu0 0.0
        %1069 = vmatpush.msra.mxu0 %v1003
        %1070 = vmatmul.f32.gmra.mxu0 %v1052
        %v1071 = vpop.f32.mrf.mxu0
        %v1072 = vadd.f32 0.0, %v1071
        %1073 = vdwg.mxu0
        %v1075 = vsel %vm708, %v999, 0
        %1077 = vmatpush.msra.mxu0 0.0
        %1078 = vmatpush.msra.mxu0 0.0
        %1079 = vmatpush.msra.mxu0 0.0
        %1080 = vmatpush.msra.mxu0 0.0
        %1081 = vmatpush.msra.mxu0 0.0
        %1082 = vmatpush.msra.mxu0 0.0
        %1083 = vmatpush.msra.mxu0 0.0
        %1084 = vmatpush.msra.mxu0 0.0
        %1085 = vmatpush.msra.mxu0 0.0
        %1086 = vmatpush.msra.mxu0 0.0
        %1087 = vmatpush.msra.mxu0 0.0
        %1088 = vmatpush.msra.mxu0 0.0
        %1089 = vmatpush.msra.mxu0 0.0
        %1090 = vmatpush.msra.mxu0 0.0
        %1091 = vmatpush.msra.mxu0 0.0
        %1092 = vmatpush.msra.mxu0 %v1004
        %1093 = vmatmul.f32.gmra.mxu0 %v1075
        %v1094 = vpop.f32.mrf.mxu0
        %v1095 = vadd.f32 0.0, %v1094
        %1096 = vdwg.mxu0
        %v1097 = vsel %vm389, %v1026, 0.0
        %v1098 = vsel %vm389, %v1049, 0.0
        %v1099 = vadd.f32 %v1097, %v1098
        %v1100 = vsel %vm389, %v1072, 0.0
        %v1101 = vadd.f32 %v1099, %v1100
        %v1102 = vsel %vm389, %v1095, 0.0
        %v1103 = vadd.f32 %v1101, %v1102
        %v1104 = vadd.f32 %v382, %v1103
        %v1105 = vld [vmem:[%s7] sm:$0x1]
        %v1106 = vmul.f32 %v1104, %v1104
        %v1107 = vsel %vm389, %v1106, 0.0
        %1108 = vadd.xlane.f32.xlu0 %v1107
        %v1109 = vpop.xlane.xlu0 %1108
        %v1110 = vmul.f32 %v1109, %v399
        %v1111 = vadd.f32 %v1110, 1e-06
        %v1112 = vrsqrt.pop %v1111
        %v1113 = vmul.f32 %v1112, %v1111
        %v1114 = vmul.f32 %v1113, %v1112
        %v1115 = vmul.f32 0.5, %v1114
        %v1116 = vsub.f32 1.5, %v1115
        %v1117 = vmul.f32 %v1112, %v1116
        %vm1118 = vweird.f32 %v1111
        %vm1119 = vweird.f32 %v1112
        %vm1120 = vmor %vm1118, %vm1119
        %v1121 = vsel %vm1120, %v1112, %v1117
        %v1122 = vmul.f32 %v1104, %v1121
        %v1124 = vperm.slane %v1105, 0
        %v1126 = vmul.f32 %v1122, %v1124
        %v1127 = vld [vmem:[%s8] sm:$0xff]
        %v1128 = vld [vmem:[%s8 + $0x8] sm:$0xff]
        %v1129 = vld [vmem:[%s8 + $0x10] sm:$0xff]
        %v1130 = vld [vmem:[%s8 + $0x18] sm:$0xff]
        %v1132 = vsel %vm389, %v1126, 0
        %1134 = vmatpush.msra.mxu0 0.0
        %1135 = vmatpush.msra.mxu0 0.0
        %1136 = vmatpush.msra.mxu0 0.0
        %1137 = vmatpush.msra.mxu0 0.0
        %1138 = vmatpush.msra.mxu0 0.0
        %1139 = vmatpush.msra.mxu0 0.0
        %1140 = vmatpush.msra.mxu0 0.0
        %1141 = vmatpush.msra.mxu0 0.0
        %1142 = vmatpush.msra.mxu0 0.0
        %1143 = vmatpush.msra.mxu0 0.0
        %1144 = vmatpush.msra.mxu0 0.0
        %1145 = vmatpush.msra.mxu0 0.0
        %1146 = vmatpush.msra.mxu0 %v1130
        %1147 = vmatpush.msra.mxu0 %v1129
        %1148 = vmatpush.msra.mxu0 %v1128
        %1149 = vmatpush.msra.mxu0 %v1127
        %1150 = vmatmul.f32.gmra.mxu0 %v1132
        %v1151 = vpop.f32.mrf.mxu0
        %v1152 = vadd.f32 0.0, %v1151
        %1153 = vdwg.mxu0
        %v1154 = vmul.f32 %v1152, 0.5
        %v1155 = vmul.f32 %v1152, %v1152
        %v1156 = vmul.f32 %v1152, %v1155
        %v1157 = vmul.f32 %v1156, 0.044715
        %v1158 = vadd.f32 %v1152, %v1157
        %v1159 = vmul.f32 %v1158, 0.7978846
        %v1160 = vtanh.pop %v1159
        %v1161 = vadd.f32 %v1160, 1.0
        %v1162 = vmul.f32 %v1154, %v1161
        %v1163 = vld [vmem:[%s9] sm:$0xff]
        %v1164 = vld [vmem:[%s9 + $0x8] sm:$0xff]
        %v1165 = vld [vmem:[%s9 + $0x10] sm:$0xff]
        %v1166 = vld [vmem:[%s9 + $0x18] sm:$0xff]
        %1167 = vmatpush.msra.mxu0 0.0
        %1168 = vmatpush.msra.mxu0 0.0
        %1169 = vmatpush.msra.mxu0 0.0
        %1170 = vmatpush.msra.mxu0 0.0
        %1171 = vmatpush.msra.mxu0 0.0
        %1172 = vmatpush.msra.mxu0 0.0
        %1173 = vmatpush.msra.mxu0 0.0
        %1174 = vmatpush.msra.mxu0 0.0
        %1175 = vmatpush.msra.mxu0 0.0
        %1176 = vmatpush.msra.mxu0 0.0
        %1177 = vmatpush.msra.mxu0 0.0
        %1178 = vmatpush.msra.mxu0 0.0
        %1179 = vmatpush.msra.mxu0 %v1166
        %1180 = vmatpush.msra.mxu0 %v1165
        %1181 = vmatpush.msra.mxu0 %v1164
        %1182 = vmatpush.msra.mxu0 %v1163
        %1183 = vmatmul.f32.gmra.mxu0 %v1132
        %v1184 = vpop.f32.mrf.mxu0
        %v1185 = vadd.f32 0.0, %v1184
        %1186 = vdwg.mxu0
        %v1187 = vmul.f32 %v1162, %v1185
        %v1188 = vld [vmem:[%s10] sm:$0xff]
        %v1189 = vld [vmem:[%s10 + $0x8] sm:$0xff]
        %v1190 = vld [vmem:[%s10 + $0x10] sm:$0xff]
        %v1191 = vld [vmem:[%s10 + $0x18] sm:$0xff]
        %v1192 = vld [vmem:[%s10 + $0x20] sm:$0xff]
        %v1193 = vld [vmem:[%s10 + $0x28] sm:$0xff]
        %v1194 = vld [vmem:[%s10 + $0x30] sm:$0xff]
        %v1195 = vld [vmem:[%s10 + $0x38] sm:$0xff]
        %vm1196 = vcmask 523264
        %v1198 = vsel %vm1196, %v1187, 0
        %1200 = vmatpush.msra.mxu0 0.0
        %1201 = vmatpush.msra.mxu0 0.0
        %1202 = vmatpush.msra.mxu0 0.0
        %1203 = vmatpush.msra.mxu0 0.0
        %1204 = vmatpush.msra.mxu0 0.0
        %1205 = vmatpush.msra.mxu0 0.0
        %1206 = vmatpush.msra.mxu0 0.0
        %1207 = vmatpush.msra.mxu0 0.0
        %1208 = vmatpush.msra.mxu0 %v1195
        %1209 = vmatpush.msra.mxu0 %v1194
        %1210 = vmatpush.msra.mxu0 %v1193
        %1211 = vmatpush.msra.mxu0 %v1192
        %1212 = vmatpush.msra.mxu0 %v1191
        %1213 = vmatpush.msra.mxu0 %v1190
        %1214 = vmatpush.msra.mxu0 %v1189
        %1215 = vmatpush.msra.mxu0 %v1188
        %1216 = vmatmul.f32.gmra.mxu0 %v1198
        %v1217 = vpop.f32.mrf.mxu0
        %v1218 = vadd.f32 0.0, %v1217
        %1219 = vdwg.mxu0
        %v1220 = vadd.f32 %v1104, %v1218
        %1221 = vst.msk [vmem:[%s377] sm:$0xff] %vm389, %v1220
        %s1222 = sand.u32 %s269, 1
        %s1223 = scalar_lea.sflag [#allocation3], %s1222
        %s1224 = sand.u32 %s269, 1
        %s1225 = smul.addr %s1224, 8
        %s1226 = scalar_lea.vmem [#allocation2], %s1225
        // Predicated region
        $region65: #{tpu_custom_call.1} parent=63 // pred_check
          %p1227 = pneg %p279
        $region66: #{tpu_custom_call.1} parent=63 // pred_check_branch
          %1229 = sbr.rel (%p1227) target = $region68
        $region67: #{tpu_custom_call.1} parent=63 // pred_region
          %1231 = vsyncadd %s1223, 0
          %s1232 = smul.addr %s25, 8
          %s1233 = scalar_lea.hbm %s11, %s1232
          %s1235 = sshll.u32 %s1226, 4
          %s1236 = int_to_ptr.vmem [resolvable:$true] %s1235
          %s1237 = sshll.u32 %s1233, 4
          %s1238 = int_to_ptr.hbm [resolvable:$true] %s1237
          %1240 = dma.vmem_to_hbm [thread:$0]  %s1236, 128, %s1238, %s1223
        $region68: #{tpu_custom_call.1} parent=63 // pred_fallthru
          _
      $region64: #{tpu_custom_call.1} parent=5 // pred_fallthru
        _
      %p1241 = scmp.le.s32.totalorder 2, %s20
      // Predicated region
      $region69: #{tpu_custom_call.1} parent=5 // pred_check
        %p1242 = pneg %p1241
      $region70: #{tpu_custom_call.1} parent=5 // pred_check_branch
        %1244 = sbr.rel (%p1242) target = $region72
      $region71: #{tpu_custom_call.1} parent=5 // pred_region
        %s1245 = ssub.s32 %s20, 2
        // Predicated region
        $region73: #{tpu_custom_call.1} parent=71 // pred_check
          %p1246 = pneg %p285
        $region74: #{tpu_custom_call.1} parent=71 // pred_check_branch
          %1248 = sbr.rel (%p1246) target = $region76
        $region75: #{tpu_custom_call.1} parent=71 // pred_region
          %s1249 = sand.u32 %s270, 1
          %s1250 = scalar_lea.sflag [#allocation3], %s1249
          %s1251 = sand.u32 %s270, 1
          %s1252 = smul.addr %s1251, 8
          %s1253 = scalar_lea.vmem [#allocation2], %s1252
          %1255 = dma.done %s1250, 128
        $region76: #{tpu_custom_call.1} parent=71 // pred_fallthru
          _
      $region72: #{tpu_custom_call.1} parent=5 // pred_fallthru
        _
    $region6: #{tpu_custom_call.1} parent=1 // loop_footer
      %s24 = sadd.s32 1, %s20
    $region7: #{tpu_custom_call.1} parent=1 // loop_footer_branch
      %19 = sbr.rel target = $region3
    $region8: #{tpu_custom_call.1} parent=1 // loop_exit
      _
    %1256 = vsyncpa [#allocation3], 1
    %s1257 = scalar_lea.sflag [#allocation3], 1
    %1258 = vsyncpa %s1257, 1

</llo_original>
